<compile_context>
chip_gen: v5e
topology: v5e:2x2
jax: 0.10.0
libtpu: 0.0.40
codegen_flags: <defaults>
</compile_context>

<pallas_src>
import functools

import jax
import jax.numpy as jnp
from jax.experimental import pallas as pl
from jax.experimental.pallas import tpu as pltpu


# --------------------------------------------------------------------------
# Kernel
# --------------------------------------------------------------------------
def _similarity_topk_kernel(x_ref, y_ref, vals_out_ref, idx_out_ref,
                            xn_ref, cvals_ref, cidx_ref, *, tau, k, tny):
    """Grid = (B, Nx_tiles, Ny_chunks), Ny axis innermost ("arbitrary").

    x_ref   : (1, TNX, D)  raw features for this Nx tile (f32)
    y_ref   : (1, TNY, D)  pre-normalized y chunk (compute dtype)
    outputs : (1, TNX, k)  softmaxed top-k values (f32) / column indices (i32)
    scratch : xn_ref (TNX, D) cached normalized x / tau,
              cvals_ref / cidx_ref (TNX, k) running top-k carry.
    """
    j = pl.program_id(2)
    neg_inf = jnp.float32(-jnp.inf)

    # ---- per-(b, i) init: cache tau-folded normalized x, reset the carry ----
    @pl.when(j == 0)
    def _init():
        x = x_ref[0].astype(jnp.float32)                       # (TNX, D)
        # F.normalize(p=2, eps=1e-12) == x * rsqrt(max(sum(x^2), 1e-24));
        # fold 1/tau into the x scale so sim never needs a separate tau pass.
        x_scale = jax.lax.rsqrt(
            jnp.maximum(jnp.sum(x * x, axis=-1, keepdims=True), 1e-24))
        x_scale = x_scale * jnp.float32(1.0 / tau)
        xn_ref[...] = (x * x_scale).astype(xn_ref.dtype)
        cvals_ref[...] = jnp.full_like(cvals_ref, neg_inf)
        cidx_ref[...] = jnp.zeros_like(cidx_ref)

    # ---- similarity of the cached x tile against this Ny chunk (MXU) ----
    sim = jax.lax.dot_general(
        xn_ref[...], y_ref[0],
        dimension_numbers=(((1,), (1,)), ((), ())),
        preferred_element_type=jnp.float32)                    # (TNX, TNY) f32

    # ---- local (within-chunk) top-k by (value desc, column asc) ----
    # TODO(synk): a hierarchical argmax (per-chunk max prefilter + re-reducing
    # only the popped chunk) needs a per-row dynamic chunk gather; left as a
    # future optimization — the exact iterative pop is kept here.
    col_ids = jax.lax.broadcasted_iota(jnp.int32, (1, tny), 1)
    base = j * tny
    work = sim
    loc_vals, loc_idx = [], []
    for _ in range(k):
        m = jnp.max(work, axis=-1, keepdims=True)                      # (TNX,1)
        a = jnp.min(jnp.where(work == m, col_ids, jnp.int32(tny)),
                    axis=-1, keepdims=True)                            # (TNX,1)
        loc_vals.append(m)
        loc_idx.append(a + base)
        work = jnp.where(col_ids == a, neg_inf, work)

    # ---- merge with the running carry (exact: value desc, global col asc) ----
    vals2 = jnp.concatenate([cvals_ref[...]] + loc_vals, axis=-1)      # (TNX,2k)
    idx2 = jnp.concatenate([cidx_ref[...]] + loc_idx, axis=-1)         # (TNX,2k)
    big = jnp.int32(2 ** 31 - 1)
    new_vals, new_idx = [], []
    for _ in range(k):
        m = jnp.max(vals2, axis=-1, keepdims=True)
        a = jnp.min(jnp.where(vals2 == m, idx2, big), axis=-1, keepdims=True)
        new_vals.append(m)
        new_idx.append(a)
        vals2 = jnp.where(idx2 == a, neg_inf, vals2)
    cvals_ref[...] = jnp.concatenate(new_vals, axis=-1)
    cidx_ref[...] = jnp.concatenate(new_idx, axis=-1)

    # ---- finalize: softmax over the k kept values, store vals + idx ----
    @pl.when(j == pl.num_programs(2) - 1)
    def _fin():
        tv = cvals_ref[...]
        mx = jnp.max(tv, axis=-1, keepdims=True)
        e = jnp.exp(tv - mx)
        # exact divide (approx reciprocal would exceed the 1e-5 check)
        vals_out_ref[0] = (e / jnp.sum(e, axis=-1, keepdims=True)
                           ).astype(vals_out_ref.dtype)
        idx_out_ref[0] = cidx_ref[...]


# --------------------------------------------------------------------------
# Tile selection / VMEM accounting
# --------------------------------------------------------------------------
_TILE_CANDIDATES = (1024, 512, 256, 128, 64, 32, 16, 8)


def _vmem_capacity_bytes(default=64 * 1024 * 1024):
    try:
        return int(pltpu.get_tpu_info().vmem_capacity_bytes)
    except Exception:
        return default  # conservative (v7x per-core VMEM)


def _tile_candidates(dim):
    cands = [c for c in _TILE_CANDIDATES if c <= dim and dim % c == 0]
    if dim not in cands:
        cands.append(dim)  # full-dim block is always a legal block shape
    return sorted(set(cands), reverse=True)


def _estimate_vmem_bytes(tnx, tny, d, k, y_itemsize, c_itemsize):
    lane = 128
    pad = lambda n: ((n + lane - 1) // lane) * lane
    dp, kp, typ = pad(d), pad(k), pad(tny)
    x_blocks = 2 * tnx * dp * 4                 # f32 x tile, double-buffered
    y_blocks = 2 * tny * dp * y_itemsize        # normalized y chunk, dbl-buffered
    out_blocks = 2 * 2 * tnx * kp * 4           # vals + idx tiles (lane padded)
    scratch = tnx * dp * c_itemsize + 2 * tnx * kp * 4   # xn cache + carry
    live = 6 * tnx * typ * 4                    # sim/work + cmp/select temps
    return x_blocks + y_blocks + out_blocks + scratch + live


def _pick_tiles(nx, ny, d, k, budget_bytes, y_itemsize, c_itemsize):
    combos = [(tx, ty) for tx in _tile_candidates(nx) for ty in _tile_candidates(ny)]
    est = {c: _estimate_vmem_bytes(c[0], c[1], d, k, y_itemsize, c_itemsize)
           for c in combos}
    fitting = [c for c in combos if est[c] <= budget_bytes]
    if fitting:
        # Prefer both tiles >= 256 (256-wide MXUs, per-step amortization),
        # then the largest Nx tile, then the largest Ny chunk.
        return max(fitting,
                   key=lambda c: (min(c[0], 256) + min(c[1], 256),
                                  c[0] + c[1], c[0]))
    return min(combos, key=lambda c: est[c])


# --------------------------------------------------------------------------
# Wrapper
# --------------------------------------------------------------------------
def pykeops_similarity(feat_x, feat_y, *, tau=0.05, k_neighbors=4,
                       tnx=None, tny=None, use_bf16_matmul=True,
                       vmem_limit_bytes=None):
    """Returns (indices (3, B*Nx*k) int32, values (B*Nx*k,) f32): the COO
    entries of the (B, Nx, Ny) sparse similarity tensor (hard=False path).

    use_bf16_matmul=True feeds bf16 operands to the MXU with f32 accumulation
    (3x MXU throughput on v5e/v6e/v7x); set False for tight f32 parity.
    """
    B, Nx, D = feat_x.shape
    By, Ny, Dy = feat_y.shape
    assert By == B and Dy == D, (feat_x.shape, feat_y.shape)
    k = int(k_neighbors)
    if k > Ny:
        raise ValueError(f"k_neighbors={k} must be <= Ny={Ny}")

    compute_dtype = jnp.bfloat16 if use_bf16_matmul else jnp.float32

    # Pre-normalize y ONCE (f32 math), then cast to the compute dtype: removes
    # the O(Ny*D) per-Nx-tile renormalization from the kernel and (for bf16)
    # halves the y DMA traffic.  x stays raw f32; its normalization is cheap,
    # tau-folded, and cached in VMEM scratch per Nx tile.
    y32 = feat_y.astype(jnp.float32)
    y_norm = (y32 / jnp.maximum(
        jnp.linalg.norm(y32, axis=-1, keepdims=True), 1e-12)).astype(compute_dtype)
    feat_x = feat_x.astype(jnp.float32)
    # NOTE: no HBM-side padding of D — block last dim == full array dim is a
    # legal BlockSpec; Mosaic pads in VMEM (saves an extra HBM pass, esp. v5e).

    if vmem_limit_bytes is None:
        vmem_limit_bytes = (_vmem_capacity_bytes() * 3) // 4
    vmem_limit_bytes = int(vmem_limit_bytes)
    budget = int(vmem_limit_bytes * 0.9)        # headroom for compiler scratch

    itemsize = jnp.dtype(compute_dtype).itemsize
    auto_tnx, auto_tny = _pick_tiles(Nx, Ny, D, k, budget, itemsize, itemsize)
    tnx = auto_tnx if tnx is None else int(tnx)
    tny = auto_tny if tny is None else int(tny)
    assert Nx % tnx == 0 and Ny % tny == 0, (Nx, tnx, Ny, tny)

    kernel = functools.partial(_similarity_topk_kernel,
                               tau=float(tau), k=k, tny=tny)

    vals, idx = pl.pallas_call(
        kernel,
        out_shape=(jax.ShapeDtypeStruct((B, Nx, k), jnp.float32),
                   jax.ShapeDtypeStruct((B, Nx, k), jnp.int32)),
        grid_spec=pltpu.PrefetchScalarGridSpec(
            num_scalar_prefetch=0,
            grid=(B, Nx // tnx, Ny // tny),        # Ny carry axis innermost
            in_specs=[
                # x tile: constant across the Ny axis -> DMA'd once per (b, i)
                pl.BlockSpec((1, tnx, D), lambda b, i, j: (b, i, 0)),
                # y chunk: streamed along the Ny axis.
                # NOTE: pl.Buffered(1) would halve its footprint (y only
                # changes per chunk anyway); kept at default double-buffering.
                pl.BlockSpec((1, tny, D), lambda b, i, j: (b, j, 0)),
            ],
            out_specs=[
                # Accumulator-style: same block across j, written at j == last.
                # NOTE: a lane-dense (B, 2k, Nx) layout would avoid masked
                # partial stores; the output is tiny so kept row-major here.
                pl.BlockSpec((1, tnx, k), lambda b, i, j: (b, i, 0)),
                pl.BlockSpec((1, tnx, k), lambda b, i, j: (b, i, 0)),
            ],
            scratch_shapes=[
                pltpu.VMEM((tnx, D), compute_dtype),   # cached normalized x/tau
                pltpu.VMEM((tnx, k), jnp.float32),     # carry: top-k values
                pltpu.VMEM((tnx, k), jnp.int32),       # carry: top-k columns
            ]),
        compiler_params=pltpu.CompilerParams(
            dimension_semantics=("parallel", "parallel", "arbitrary"),
            vmem_limit_bytes=vmem_limit_bytes),
    )(feat_x, y_norm)

    # Glue: pack COO indices exactly like the torch loop does.
    batch_idx = jnp.repeat(jnp.arange(B, dtype=jnp.int32), Nx * k)
    row_idx = jnp.tile(jnp.repeat(jnp.arange(Nx, dtype=jnp.int32), k), B)
    col_idx = idx.reshape(-1)
    indices = jnp.stack([batch_idx, row_idx, col_idx], axis=0)   # (3, B*Nx*k)
    values = vals.reshape(-1)                                    # (B*Nx*k,)
    # TODO(synk): torch .coalesce() (index sort / duplicate merge) and the
    # hard=True scatter_max path are sparse bookkeeping with no Pallas hot path.
    return indices, values


# --------------------------------------------------------------------------
# Reference / test harness
# --------------------------------------------------------------------------
def _reference(feat_x, feat_y, tau, k):
    xn = feat_x / jnp.maximum(
        jnp.linalg.norm(feat_x, axis=-1, keepdims=True), 1e-12)
    yn = feat_y / jnp.maximum(
        jnp.linalg.norm(feat_y, axis=-1, keepdims=True), 1e-12)
    sim = jnp.einsum("bnd,bmd->bnm", xn, yn) / tau
    tv, ti = jax.lax.top_k(sim, k)
    return ti, jax.nn.softmax(tv, axis=-1)


def _to_dense(indices, values, shape):
    dense = jnp.zeros(shape, jnp.float32)
    return dense.at[indices[0], indices[1], indices[2]].add(values)


if __name__ == "__main__":
    B, Nx, Ny, D, K = 2, 32, 48, 32, 4
    TAU = 0.05

    key = jax.random.PRNGKey(0)
    kx, ky = jax.random.split(key)
    feat_x = jax.random.normal(kx, (B, Nx, D), dtype=jnp.float32)
    feat_y = jax.random.normal(ky, (B, Ny, D), dtype=jnp.float32)

    # 1) Default path (bf16 MXU, auto tiles): run + sanity checks.
    idx_bf, val_bf = pykeops_similarity(feat_x, feat_y, tau=TAU, k_neighbors=K)
    jax.block_until_ready((idx_bf, val_bf))
    assert bool(jnp.all(jnp.isfinite(val_bf)))
    assert bool(jnp.all((idx_bf[2] >= 0) & (idx_bf[2] < Ny)))
    row_sums = val_bf.reshape(B * Nx, K).sum(axis=-1)
    assert bool(jnp.allclose(row_sums, 1.0, atol=1e-3))

    # 2) f32 path with explicit small tiles (exercises the multi-chunk carry
    #    merge and multiple Nx tiles): exact dense-scatter check vs reference.
    indices, values = pykeops_similarity(
        feat_x, feat_y, tau=TAU, k_neighbors=K,
        use_bf16_matmul=False, tnx=16, tny=16)
    jax.block_until_ready((indices, values))

    ref_idx, ref_vals = _reference(feat_x, feat_y, TAU, K)
    ref_b = jnp.repeat(jnp.arange(B, dtype=jnp.int32), Nx * K)
    ref_r = jnp.tile(jnp.repeat(jnp.arange(Nx, dtype=jnp.int32), K), B)
    ref_indices = jnp.stack([ref_b, ref_r, ref_idx.reshape(-1)], axis=0)

    dense_kernel = _to_dense(indices, values, (B, Nx, Ny))
    dense_ref = _to_dense(ref_indices, ref_vals.reshape(-1), (B, Nx, Ny))
    assert jnp.allclose(dense_kernel, dense_ref, atol=1e-4, rtol=1e-4), (
        float(jnp.max(jnp.abs(dense_kernel - dense_ref))))

    print("KERNEL_OK")
</pallas_src>

<mosaic_0001>
module attributes {stable_mosaic.version = 11 : i64} {
  func.func @_similarity_topk_kernel(%arg0: i32, %arg1: i32, %arg2: i32, %arg3: memref<1x32x32xf32, #tpu.memory_space<vmem>>, %arg4: memref<1x48x32xbf16, #tpu.memory_space<vmem>>, %arg5: memref<1x32x4xf32, #tpu.memory_space<vmem>>, %arg6: memref<1x32x4xi32, #tpu.memory_space<vmem>>, %arg7: memref<32x32xbf16, #tpu.memory_space<vmem>>, %arg8: memref<32x4xf32, #tpu.memory_space<vmem>>, %arg9: memref<32x4xi32, #tpu.memory_space<vmem>>) attributes {dimension_semantics = [#tpu.dimension_semantics<parallel>, #tpu.dimension_semantics<parallel>, #tpu.dimension_semantics<arbitrary>], iteration_bounds = array<i64: 2, 1, 1>, scalar_prefetch = 0 : i64, scratch_operands = 3 : i64, tpu.core_type = #tpu.core_type<tc>, window_params = [{transform_indices = @transform_0, window_bounds = array<i64: 1, 32, 32>}, {transform_indices = @transform_1, window_bounds = array<i64: 1, 48, 32>}, {transform_indices = @transform_2, window_bounds = array<i64: 1, 32, 4>}, {transform_indices = @transform_3, window_bounds = array<i64: 1, 32, 4>}]} {
    %c0_i32 = arith.constant 0 : i32
    %0 = arith.cmpi eq, %arg2, %c0_i32 : i32
    %1 = arith.extui %0 : i1 to i32
    %cst = arith.constant 0xFF800000 : f32
    %c0_i32_0 = arith.constant 0 : i32
    %2 = arith.cmpi ne, %1, %c0_i32_0 : i32
    scf.if %2 {
      %c0_45 = arith.constant 0 : index
      %c0_46 = arith.constant 0 : index
      %c0_47 = arith.constant 0 : index
      %127 = vector.load %arg3[%c0_45, %c0_46, %c0_47] : memref<1x32x32xf32, #tpu.memory_space<vmem>>, vector<1x32x32xf32>
      %128 = vector.shape_cast %127 : vector<1x32x32xf32> to vector<32x32xf32>
      %129 = arith.mulf %128, %128 : vector<32x32xf32>
      %cst_48 = arith.constant dense<0.000000e+00> : vector<32xf32>
      %130 = vector.multi_reduction <add>, %129, %cst_48 [1] : vector<32x32xf32> to vector<32xf32>
      %131 = vector.shape_cast %130 : vector<32xf32> to vector<32x1xf32>
      %cst_49 = arith.constant 1.000000e-24 : f32
      %132 = vector.broadcast %cst_49 : f32 to vector<32x1xf32>
      %133 = arith.maximumf %131, %132 : vector<32x1xf32>
      %134 = math.rsqrt %133 : vector<32x1xf32>
      %cst_50 = arith.constant 2.000000e+01 : f32
      %135 = vector.broadcast %cst_50 : f32 to vector<32x1xf32>
      %136 = arith.mulf %134, %135 : vector<32x1xf32>
      %137 = vector.broadcast %136 : vector<32x1xf32> to vector<32x32xf32>
      %138 = arith.mulf %128, %137 : vector<32x32xf32>
      %139 = arith.truncf %138 : vector<32x32xf32> to vector<32x32xbf16>
      %c0_51 = arith.constant 0 : index
      %c0_52 = arith.constant 0 : index
      %140 = vector.load %arg7[%c0_51, %c0_52] : memref<32x32xbf16, #tpu.memory_space<vmem>>, vector<32x32xbf16>
      tpu.vector_store %arg7[%c0_51, %c0_52], %139 {strides = array<i32>} : memref<32x32xbf16, #tpu.memory_space<vmem>>, vector<32x32xbf16>,
      %141 = vector.broadcast %cst : f32 to vector<32x4xf32>
      %c0_53 = arith.constant 0 : index
      %c0_54 = arith.constant 0 : index
      %142 = vector.load %arg8[%c0_53, %c0_54] : memref<32x4xf32, #tpu.memory_space<vmem>>, vector<32x4xf32>
      tpu.vector_store %arg8[%c0_53, %c0_54], %141 {strides = array<i32>} : memref<32x4xf32, #tpu.memory_space<vmem>>, vector<32x4xf32>,
      %c0_i32_55 = arith.constant 0 : i32
      %143 = vector.broadcast %c0_i32_55 : i32 to vector<32x4xi32>
      %c0_56 = arith.constant 0 : index
      %c0_57 = arith.constant 0 : index
      %144 = vector.load %arg9[%c0_56, %c0_57] : memref<32x4xi32, #tpu.memory_space<vmem>>, vector<32x4xi32>
      tpu.vector_store %arg9[%c0_56, %c0_57], %143 {strides = array<i32>} : memref<32x4xi32, #tpu.memory_space<vmem>>, vector<32x4xi32>,
    } else {
    }
    %c0 = arith.constant 0 : index
    %c0_1 = arith.constant 0 : index
    %3 = vector.load %arg7[%c0, %c0_1] : memref<32x32xbf16, #tpu.memory_space<vmem>>, vector<32x32xbf16>
    %c0_2 = arith.constant 0 : index
    %c0_3 = arith.constant 0 : index
    %c0_4 = arith.constant 0 : index
    %4 = vector.load %arg4[%c0_2, %c0_3, %c0_4] : memref<1x48x32xbf16, #tpu.memory_space<vmem>>, vector<1x48x32xbf16>
    %5 = vector.shape_cast %4 : vector<1x48x32xbf16> to vector<48x32xbf16>
    %cst_5 = arith.constant dense<0.000000e+00> : vector<32x48xf32>
    %6 = tpu.matmul %3, %5, %cst_5 {dimension_numbers = #tpu.dot_dimension_numbers<[1], [1], [0], [0], [0, 0, 1, 0], [], []>} : vector<32x32xbf16>, vector<48x32xbf16>, vector<32x48xf32> -> vector<32x48xf32>
    %7 = tpu.iota {dimensions = array<i32: 1>} : vector<1x48xi32>
    %c48_i32 = arith.constant 48 : i32
    %8 = arith.muli %arg2, %c48_i32 : i32
    %cst_6 = arith.constant dense<0xFF800000> : vector<32xf32>
    %9 = vector.multi_reduction <maximumf>, %6, %cst_6 [1] : vector<32x48xf32> to vector<32xf32>
    %10 = vector.shape_cast %9 : vector<32xf32> to vector<32x1xf32>
    %11 = vector.broadcast %10 : vector<32x1xf32> to vector<32x48xf32>
    %12 = arith.cmpf oeq, %6, %11 : vector<32x48xf32>
    %c48_i32_7 = arith.constant 48 : i32
    %13 = vector.shape_cast %7 : vector<1x48xi32> to vector<1x48xi32>
    %14 = vector.broadcast %13 : vector<1x48xi32> to vector<32x48xi32>
    %15 = vector.broadcast %c48_i32_7 : i32 to vector<32x48xi32>
    %16 = arith.select %12, %14, %15 : vector<32x48xi1>, vector<32x48xi32>
    %cst_8 = arith.constant dense<2147483647> : vector<32xi32>
    %17 = vector.multi_reduction <minsi>, %16, %cst_8 [1] : vector<32x48xi32> to vector<32xi32>
    %18 = vector.shape_cast %17 : vector<32xi32> to vector<32x1xi32>
    %19 = vector.broadcast %8 : i32 to vector<32x1xi32>
    %20 = arith.addi %18, %19 : vector<32x1xi32>
    %21 = vector.broadcast %7 : vector<1x48xi32> to vector<32x48xi32>
    %22 = vector.broadcast %18 : vector<32x1xi32> to vector<32x48xi32>
    %23 = arith.cmpi eq, %21, %22 : vector<32x48xi32>
    %cst_9 = arith.constant 0xFF800000 : f32
    %24 = vector.broadcast %cst_9 : f32 to vector<32x48xf32>
    %25 = arith.select %23, %24, %6 : vector<32x48xi1>, vector<32x48xf32>
    %cst_10 = arith.constant dense<0xFF800000> : vector<32xf32>
    %26 = vector.multi_reduction <maximumf>, %25, %cst_10 [1] : vector<32x48xf32> to vector<32xf32>
    %27 = vector.shape_cast %26 : vector<32xf32> to vector<32x1xf32>
    %28 = vector.broadcast %27 : vector<32x1xf32> to vector<32x48xf32>
    %29 = arith.cmpf oeq, %25, %28 : vector<32x48xf32>
    %c48_i32_11 = arith.constant 48 : i32
    %30 = vector.shape_cast %7 : vector<1x48xi32> to vector<1x48xi32>
    %31 = vector.broadcast %30 : vector<1x48xi32> to vector<32x48xi32>
    %32 = vector.broadcast %c48_i32_11 : i32 to vector<32x48xi32>
    %33 = arith.select %29, %31, %32 : vector<32x48xi1>, vector<32x48xi32>
    %cst_12 = arith.constant dense<2147483647> : vector<32xi32>
    %34 = vector.multi_reduction <minsi>, %33, %cst_12 [1] : vector<32x48xi32> to vector<32xi32>
    %35 = vector.shape_cast %34 : vector<32xi32> to vector<32x1xi32>
    %36 = vector.broadcast %8 : i32 to vector<32x1xi32>
    %37 = arith.addi %35, %36 : vector<32x1xi32>
    %38 = vector.broadcast %7 : vector<1x48xi32> to vector<32x48xi32>
    %39 = vector.broadcast %35 : vector<32x1xi32> to vector<32x48xi32>
    %40 = arith.cmpi eq, %38, %39 : vector<32x48xi32>
    %cst_13 = arith.constant 0xFF800000 : f32
    %41 = vector.broadcast %cst_13 : f32 to vector<32x48xf32>
    %42 = arith.select %40, %41, %25 : vector<32x48xi1>, vector<32x48xf32>
    %cst_14 = arith.constant dense<0xFF800000> : vector<32xf32>
    %43 = vector.multi_reduction <maximumf>, %42, %cst_14 [1] : vector<32x48xf32> to vector<32xf32>
    %44 = vector.shape_cast %43 : vector<32xf32> to vector<32x1xf32>
    %45 = vector.broadcast %44 : vector<32x1xf32> to vector<32x48xf32>
    %46 = arith.cmpf oeq, %42, %45 : vector<32x48xf32>
    %c48_i32_15 = arith.constant 48 : i32
    %47 = vector.shape_cast %7 : vector<1x48xi32> to vector<1x48xi32>
    %48 = vector.broadcast %47 : vector<1x48xi32> to vector<32x48xi32>
    %49 = vector.broadcast %c48_i32_15 : i32 to vector<32x48xi32>
    %50 = arith.select %46, %48, %49 : vector<32x48xi1>, vector<32x48xi32>
    %cst_16 = arith.constant dense<2147483647> : vector<32xi32>
    %51 = vector.multi_reduction <minsi>, %50, %cst_16 [1] : vector<32x48xi32> to vector<32xi32>
    %52 = vector.shape_cast %51 : vector<32xi32> to vector<32x1xi32>
    %53 = vector.broadcast %8 : i32 to vector<32x1xi32>
    %54 = arith.addi %52, %53 : vector<32x1xi32>
    %55 = vector.broadcast %7 : vector<1x48xi32> to vector<32x48xi32>
    %56 = vector.broadcast %52 : vector<32x1xi32> to vector<32x48xi32>
    %57 = arith.cmpi eq, %55, %56 : vector<32x48xi32>
    %cst_17 = arith.constant 0xFF800000 : f32
    %58 = vector.broadcast %cst_17 : f32 to vector<32x48xf32>
    %59 = arith.select %57, %58, %42 : vector<32x48xi1>, vector<32x48xf32>
    %cst_18 = arith.constant dense<0xFF800000> : vector<32xf32>
    %60 = vector.multi_reduction <maximumf>, %59, %cst_18 [1] : vector<32x48xf32> to vector<32xf32>
    %61 = vector.shape_cast %60 : vector<32xf32> to vector<32x1xf32>
    %62 = vector.broadcast %61 : vector<32x1xf32> to vector<32x48xf32>
    %63 = arith.cmpf oeq, %59, %62 : vector<32x48xf32>
    %c48_i32_19 = arith.constant 48 : i32
    %64 = vector.shape_cast %7 : vector<1x48xi32> to vector<1x48xi32>
    %65 = vector.broadcast %64 : vector<1x48xi32> to vector<32x48xi32>
    %66 = vector.broadcast %c48_i32_19 : i32 to vector<32x48xi32>
    %67 = arith.select %63, %65, %66 : vector<32x48xi1>, vector<32x48xi32>
    %cst_20 = arith.constant dense<2147483647> : vector<32xi32>
    %68 = vector.multi_reduction <minsi>, %67, %cst_20 [1] : vector<32x48xi32> to vector<32xi32>
    %69 = vector.shape_cast %68 : vector<32xi32> to vector<32x1xi32>
    %70 = vector.broadcast %8 : i32 to vector<32x1xi32>
    %71 = arith.addi %69, %70 : vector<32x1xi32>
    %c0_21 = arith.constant 0 : index
    %c0_22 = arith.constant 0 : index
    %72 = vector.load %arg8[%c0_21, %c0_22] : memref<32x4xf32, #tpu.memory_space<vmem>>, vector<32x4xf32>
    %73 = tpu.concatenate %72, %10, %27, %44, %61 in 1 : vector<32x4xf32>, vector<32x1xf32>, vector<32x1xf32>, vector<32x1xf32>, vector<32x1xf32> -> vector<32x8xf32>
    %c0_23 = arith.constant 0 : index
    %c0_24 = arith.constant 0 : index
    %74 = vector.load %arg9[%c0_23, %c0_24] : memref<32x4xi32, #tpu.memory_space<vmem>>, vector<32x4xi32>
    %75 = tpu.concatenate %74, %20, %37, %54, %71 in 1 : vector<32x4xi32>, vector<32x1xi32>, vector<32x1xi32>, vector<32x1xi32>, vector<32x1xi32> -> vector<32x8xi32>
    %cst_25 = arith.constant dense<0xFF800000> : vector<32xf32>
    %76 = vector.multi_reduction <maximumf>, %73, %cst_25 [1] : vector<32x8xf32> to vector<32xf32>
    %77 = vector.shape_cast %76 : vector<32xf32> to vector<32x1xf32>
    %78 = vector.broadcast %77 : vector<32x1xf32> to vector<32x8xf32>
    %79 = arith.cmpf oeq, %73, %78 : vector<32x8xf32>
    %c2147483647_i32 = arith.constant 2147483647 : i32
    %80 = vector.broadcast %c2147483647_i32 : i32 to vector<32x8xi32>
    %81 = arith.select %79, %75, %80 : vector<32x8xi1>, vector<32x8xi32>
    %cst_26 = arith.constant dense<2147483647> : vector<32xi32>
    %82 = vector.multi_reduction <minsi>, %81, %cst_26 [1] : vector<32x8xi32> to vector<32xi32>
    %83 = vector.shape_cast %82 : vector<32xi32> to vector<32x1xi32>
    %84 = vector.broadcast %83 : vector<32x1xi32> to vector<32x8xi32>
    %85 = arith.cmpi eq, %75, %84 : vector<32x8xi32>
    %cst_27 = arith.constant 0xFF800000 : f32
    %86 = vector.broadcast %cst_27 : f32 to vector<32x8xf32>
    %87 = arith.select %85, %86, %73 : vector<32x8xi1>, vector<32x8xf32>
    %cst_28 = arith.constant dense<0xFF800000> : vector<32xf32>
    %88 = vector.multi_reduction <maximumf>, %87, %cst_28 [1] : vector<32x8xf32> to vector<32xf32>
    %89 = vector.shape_cast %88 : vector<32xf32> to vector<32x1xf32>
    %90 = vector.broadcast %89 : vector<32x1xf32> to vector<32x8xf32>
    %91 = arith.cmpf oeq, %87, %90 : vector<32x8xf32>
    %c2147483647_i32_29 = arith.constant 2147483647 : i32
    %92 = vector.broadcast %c2147483647_i32_29 : i32 to vector<32x8xi32>
    %93 = arith.select %91, %75, %92 : vector<32x8xi1>, vector<32x8xi32>
    %cst_30 = arith.constant dense<2147483647> : vector<32xi32>
    %94 = vector.multi_reduction <minsi>, %93, %cst_30 [1] : vector<32x8xi32> to vector<32xi32>
    %95 = vector.shape_cast %94 : vector<32xi32> to vector<32x1xi32>
    %96 = vector.broadcast %95 : vector<32x1xi32> to vector<32x8xi32>
    %97 = arith.cmpi eq, %75, %96 : vector<32x8xi32>
    %cst_31 = arith.constant 0xFF800000 : f32
    %98 = vector.broadcast %cst_31 : f32 to vector<32x8xf32>
    %99 = arith.select %97, %98, %87 : vector<32x8xi1>, vector<32x8xf32>
    %cst_32 = arith.constant dense<0xFF800000> : vector<32xf32>
    %100 = vector.multi_reduction <maximumf>, %99, %cst_32 [1] : vector<32x8xf32> to vector<32xf32>
    %101 = vector.shape_cast %100 : vector<32xf32> to vector<32x1xf32>
    %102 = vector.broadcast %101 : vector<32x1xf32> to vector<32x8xf32>
    %103 = arith.cmpf oeq, %99, %102 : vector<32x8xf32>
    %c2147483647_i32_33 = arith.constant 2147483647 : i32
    %104 = vector.broadcast %c2147483647_i32_33 : i32 to vector<32x8xi32>
    %105 = arith.select %103, %75, %104 : vector<32x8xi1>, vector<32x8xi32>
    %cst_34 = arith.constant dense<2147483647> : vector<32xi32>
    %106 = vector.multi_reduction <minsi>, %105, %cst_34 [1] : vector<32x8xi32> to vector<32xi32>
    %107 = vector.shape_cast %106 : vector<32xi32> to vector<32x1xi32>
    %108 = vector.broadcast %107 : vector<32x1xi32> to vector<32x8xi32>
    %109 = arith.cmpi eq, %75, %108 : vector<32x8xi32>
    %cst_35 = arith.constant 0xFF800000 : f32
    %110 = vector.broadcast %cst_35 : f32 to vector<32x8xf32>
    %111 = arith.select %109, %110, %99 : vector<32x8xi1>, vector<32x8xf32>
    %cst_36 = arith.constant dense<0xFF800000> : vector<32xf32>
    %112 = vector.multi_reduction <maximumf>, %111, %cst_36 [1] : vector<32x8xf32> to vector<32xf32>
    %113 = vector.shape_cast %112 : vector<32xf32> to vector<32x1xf32>
    %114 = vector.broadcast %113 : vector<32x1xf32> to vector<32x8xf32>
    %115 = arith.cmpf oeq, %111, %114 : vector<32x8xf32>
    %c2147483647_i32_37 = arith.constant 2147483647 : i32
    %116 = vector.broadcast %c2147483647_i32_37 : i32 to vector<32x8xi32>
    %117 = arith.select %115, %75, %116 : vector<32x8xi1>, vector<32x8xi32>
    %cst_38 = arith.constant dense<2147483647> : vector<32xi32>
    %118 = vector.multi_reduction <minsi>, %117, %cst_38 [1] : vector<32x8xi32> to vector<32xi32>
    %119 = vector.shape_cast %118 : vector<32xi32> to vector<32x1xi32>
    %120 = tpu.concatenate %77, %89, %101, %113 in 1 : vector<32x1xf32>, vector<32x1xf32>, vector<32x1xf32>, vector<32x1xf32> -> vector<32x4xf32>
    %c0_39 = arith.constant 0 : index
    %c0_40 = arith.constant 0 : index
    %121 = vector.load %arg8[%c0_39, %c0_40] : memref<32x4xf32, #tpu.memory_space<vmem>>, vector<32x4xf32>
    tpu.vector_store %arg8[%c0_39, %c0_40], %120 {strides = array<i32>} : memref<32x4xf32, #tpu.memory_space<vmem>>, vector<32x4xf32>,
    %122 = tpu.concatenate %83, %95, %107, %119 in 1 : vector<32x1xi32>, vector<32x1xi32>, vector<32x1xi32>, vector<32x1xi32> -> vector<32x4xi32>
    %c0_41 = arith.constant 0 : index
    %c0_42 = arith.constant 0 : index
    %123 = vector.load %arg9[%c0_41, %c0_42] : memref<32x4xi32, #tpu.memory_space<vmem>>, vector<32x4xi32>
    tpu.vector_store %arg9[%c0_41, %c0_42], %122 {strides = array<i32>} : memref<32x4xi32, #tpu.memory_space<vmem>>, vector<32x4xi32>,
    %c0_i32_43 = arith.constant 0 : i32
    %124 = arith.cmpi eq, %arg2, %c0_i32_43 : i32
    %125 = arith.extui %124 : i1 to i32
    %c0_i32_44 = arith.constant 0 : i32
    %126 = arith.cmpi ne, %125, %c0_i32_44 : i32
    scf.if %126 {
      %c0_45 = arith.constant 0 : index
      %c0_46 = arith.constant 0 : index
      %127 = vector.load %arg8[%c0_45, %c0_46] : memref<32x4xf32, #tpu.memory_space<vmem>>, vector<32x4xf32>
      %cst_47 = arith.constant dense<0xFF800000> : vector<32xf32>
      %128 = vector.multi_reduction <maximumf>, %127, %cst_47 [1] : vector<32x4xf32> to vector<32xf32>
      %129 = vector.shape_cast %128 : vector<32xf32> to vector<32x1xf32>
      %130 = vector.broadcast %129 : vector<32x1xf32> to vector<32x4xf32>
      %131 = arith.subf %127, %130 : vector<32x4xf32>
      %132 = math.exp %131 : vector<32x4xf32>
      %cst_48 = arith.constant dense<0.000000e+00> : vector<32xf32>
      %133 = vector.multi_reduction <add>, %132, %cst_48 [1] : vector<32x4xf32> to vector<32xf32>
      %134 = vector.shape_cast %133 : vector<32xf32> to vector<32x1xf32>
      %135 = vector.broadcast %134 : vector<32x1xf32> to vector<32x4xf32>
      %136 = arith.divf %132, %135 : vector<32x4xf32>
      %c0_49 = arith.constant 0 : index
      %c0_50 = arith.constant 0 : index
      %c0_51 = arith.constant 0 : index
      %137 = vector.load %arg5[%c0_49, %c0_50, %c0_51] : memref<1x32x4xf32, #tpu.memory_space<vmem>>, vector<1x32x4xf32>
      %138 = vector.shape_cast %137 : vector<1x32x4xf32> to vector<32x4xf32>
      %139 = vector.shape_cast %136 : vector<32x4xf32> to vector<1x32x4xf32>
      tpu.vector_store %arg5[%c0_49, %c0_50, %c0_51], %139 {strides = array<i32>} : memref<1x32x4xf32, #tpu.memory_space<vmem>>, vector<1x32x4xf32>,
      %c0_52 = arith.constant 0 : index
      %c0_53 = arith.constant 0 : index
      %140 = vector.load %arg9[%c0_52, %c0_53] : memref<32x4xi32, #tpu.memory_space<vmem>>, vector<32x4xi32>
      %c0_54 = arith.constant 0 : index
      %c0_55 = arith.constant 0 : index
      %c0_56 = arith.constant 0 : index
      %141 = vector.load %arg6[%c0_54, %c0_55, %c0_56] : memref<1x32x4xi32, #tpu.memory_space<vmem>>, vector<1x32x4xi32>
      %142 = vector.shape_cast %141 : vector<1x32x4xi32> to vector<32x4xi32>
      %143 = vector.shape_cast %140 : vector<32x4xi32> to vector<1x32x4xi32>
      tpu.vector_store %arg6[%c0_54, %c0_55, %c0_56], %143 {strides = array<i32>} : memref<1x32x4xi32, #tpu.memory_space<vmem>>, vector<1x32x4xi32>,
    } else {
    }
    return
  }
  func.func @transform_0(%arg0: i32, %arg1: i32, %arg2: i32) -> (i32, i32, i32) {
    %c0_i32 = arith.constant 0 : i32
    %c0_i32_0 = arith.constant 0 : i32
    return %arg0, %arg1, %c0_i32 : i32, i32, i32
  }
  func.func @transform_1(%arg0: i32, %arg1: i32, %arg2: i32) -> (i32, i32, i32) {
    %c0_i32 = arith.constant 0 : i32
    %c0_i32_0 = arith.constant 0 : i32
    return %arg0, %arg2, %c0_i32 : i32, i32, i32
  }
  func.func @transform_2(%arg0: i32, %arg1: i32, %arg2: i32) -> (i32, i32, i32) {
    %c0_i32 = arith.constant 0 : i32
    %c0_i32_0 = arith.constant 0 : i32
    return %arg0, %arg1, %c0_i32 : i32, i32, i32
  }
  func.func @transform_3(%arg0: i32, %arg1: i32, %arg2: i32) -> (i32, i32, i32) {
    %c0_i32 = arith.constant 0 : i32
    %c0_i32_0 = arith.constant 0 : i32
    return %arg0, %arg1, %c0_i32 : i32, i32, i32
  }
}

</mosaic_0001>

<llo_original>
// kernel: tpu_custom_call.1
$region0: #{tpu_custom_call.1}
  #allocation0 [shape = 'u32[]', space=smem, size = 0x4, offset = 0x4, fixed_abs, tag = 'smem constant byte address 0x4 - core index']
  #allocation1 [shape = 'u32[72,128]{1,0:T(1,128)}', space=vmem, size = 0x9000, scoped, tag = 'internal scratch']
  #allocation2 [shape = 'bf16[32,32]{1,0:T(8,128)(2,1)}', space=vmem, size = 0x2000, scoped, tag = 'scratch operand']
  #allocation3 [shape = 'f32[32,4]{1,0:T(8,128)}', space=vmem, size = 0x4000, scoped, tag = 'scratch operand']
  #allocation4 [shape = 's32[32,4]{1,0:T(8,128)}', space=vmem, size = 0x4000, scoped, tag = 'scratch operand']
  %s0 = inlined_call_operand.vmem [shape: f32[2,32,32], index: 0, kind: input, shape index: {}]
  %s1 = inlined_call_operand.vmem [shape: bf16[2,48,32], index: 1, kind: input, shape index: {}]
  %s2 = inlined_call_operand.vmem [shape: f32[2,32,4], index: 2, kind: output, shape index: {0}]
  %s3 = inlined_call_operand.vmem [shape: s32[2,32,4], index: 3, kind: output, shape index: {1}]
  %4 = xla_tuple %s2, %s3
  %s5 = sld [smem:[#allocation0]]
  $region57: #{tpu_custom_call.1} parent=0
    _
  %s7 = ssub.s32 1, %s5
  %s8 = scalar_select 0, %s7, %s5
  loop: start=0, step=1, limit=4
  $region2: #{tpu_custom_call.1} parent=0 // loop_pre_header
    _
  $region3: #{tpu_custom_call.1} parent=0 // loop_header
    %s10 = sphi 0, %s14
    %p11 = scmp.ge.s32.totalorder %s10, 4
    %s17 = sphi 0, %s36
    %s18 = sphi 0, %s32
    %s19 = sphi 0, %s28
    %s20 = sphi 0, %s17
    %s21 = sphi 0, %s18
    %s22 = sphi 0, %s19
    %s23 = sphi 0, %s20
    %s24 = sphi 0, %s21
    %s25 = sphi 0, %s22
    %s41 = sphi 0, %s43
    %s44 = sphi 0, %s41
    %s45 = sphi 0, %s44
    %s61 = sphi 0, %s45
    %s69 = sphi 0, %s71
    %s72 = sphi 0, %s69
    %s73 = sphi 0, %s72
    %s89 = sphi 0, %s73
    %s97 = sphi 0, %s99
    %s100 = sphi 0, %s97
    %s101 = sphi 0, %s100
    %s117 = sphi 0, %s101
    %s125 = sphi 0, %s127
    %s128 = sphi 0, %s125
    %s129 = sphi 0, %s128
    %s145 = sphi 0, %s129
  $region4: #{tpu_custom_call.1} parent=0 // loop_header_branch
    %13 = sbr.rel (%p11) target = $region8
  $region5: #{tpu_custom_call.1} parent=0 // loop_body
    %s15 = ssub.s32 %s10, 1
    %s16 = ssub.s32 %s10, 2
    %s26 = sadd.s32 1, %s19
    %p27 = scmp.ge.s32.totalorder %s26, 1
    %s28 = scalar_select %p27, 0, %s26
    %s29 = sadd.s32 1, %s18
    %s30 = scalar_select %p27, %s29, %s18
    %p31 = scmp.ge.s32.totalorder %s30, 1
    %s32 = scalar_select %p31, 0, %s30
    %s33 = sadd.s32 1, %s17
    %s34 = scalar_select %p31, %s33, %s17
    %p35 = scmp.ge.s32.totalorder %s34, 2
    %s36 = scalar_select %p35, 0, %s34
    %s37 = ssub.s32 %s17, %s36
    %s38 = ssub.s32 %s18, %s32
    %s39 = sor.u32 %s37, %s38
    %p40 = scmp.eq.s32.totalorder %s39, 0
    %s42 = sadd.s32 %s41, 1
    %s43 = scalar_select %p40, %s41, %s42
    %p46 = pneg %p40
    %p47 = scmp.eq.s32.totalorder %s10, 1
    %p48 = por %p46, %p47
    %p49 = scmp.ne.s32.totalorder %s41, %s44
    %p50 = scmp.eq.s32.totalorder %s10, 0
    %p51 = por %p49, %p50
    %p52 = scmp.ne.s32.totalorder %s41, %s44
    %p53 = scmp.eq.s32.totalorder %s15, 1
    %p54 = por %p52, %p53
    %p55 = scmp.ne.s32.totalorder %s44, %s45
    %p56 = scmp.eq.s32.totalorder %s15, 0
    %p57 = por %p55, %p56
    %p58 = scmp.ne.s32.totalorder %s44, %s45
    %p59 = scmp.eq.s32.totalorder %s16, 1
    %p60 = por %p58, %p59
    %p62 = scmp.ne.s32.totalorder %s45, %s61
    %p63 = scmp.eq.s32.totalorder %s16, 0
    %p64 = por %p62, %p63
    %s65 = ssub.s32 %s17, %s36
    %s66 = ssub.s32 %s19, %s28
    %s67 = sor.u32 %s65, %s66
    %p68 = scmp.eq.s32.totalorder %s67, 0
    %s70 = sadd.s32 %s69, 1
    %s71 = scalar_select %p68, %s69, %s70
    %p74 = pneg %p68
    %p75 = scmp.eq.s32.totalorder %s10, 1
    %p76 = por %p74, %p75
    %p77 = scmp.ne.s32.totalorder %s69, %s72
    %p78 = scmp.eq.s32.totalorder %s10, 0
    %p79 = por %p77, %p78
    %p80 = scmp.ne.s32.totalorder %s69, %s72
    %p81 = scmp.eq.s32.totalorder %s15, 1
    %p82 = por %p80, %p81
    %p83 = scmp.ne.s32.totalorder %s72, %s73
    %p84 = scmp.eq.s32.totalorder %s15, 0
    %p85 = por %p83, %p84
    %p86 = scmp.ne.s32.totalorder %s72, %s73
    %p87 = scmp.eq.s32.totalorder %s16, 1
    %p88 = por %p86, %p87
    %p90 = scmp.ne.s32.totalorder %s73, %s89
    %p91 = scmp.eq.s32.totalorder %s16, 0
    %p92 = por %p90, %p91
    %s93 = ssub.s32 %s17, %s36
    %s94 = ssub.s32 %s18, %s32
    %s95 = sor.u32 %s93, %s94
    %p96 = scmp.eq.s32.totalorder %s95, 0
    %s98 = sadd.s32 %s97, 1
    %s99 = scalar_select %p96, %s97, %s98
    %p102 = pneg %p96
    %p103 = scmp.eq.s32.totalorder %s10, 1
    %p104 = por %p102, %p103
    %p105 = scmp.ne.s32.totalorder %s97, %s100
    %p106 = scmp.eq.s32.totalorder %s10, 0
    %p107 = por %p105, %p106
    %p108 = scmp.ne.s32.totalorder %s97, %s100
    %p109 = scmp.eq.s32.totalorder %s15, 1
    %p110 = por %p108, %p109
    %p111 = scmp.ne.s32.totalorder %s100, %s101
    %p112 = scmp.eq.s32.totalorder %s15, 0
    %p113 = por %p111, %p112
    %p114 = scmp.ne.s32.totalorder %s100, %s101
    %p115 = scmp.eq.s32.totalorder %s16, 1
    %p116 = por %p114, %p115
    %p118 = scmp.ne.s32.totalorder %s101, %s117
    %p119 = scmp.eq.s32.totalorder %s16, 0
    %p120 = por %p118, %p119
    %s121 = ssub.s32 %s17, %s36
    %s122 = ssub.s32 %s18, %s32
    %s123 = sor.u32 %s121, %s122
    %p124 = scmp.eq.s32.totalorder %s123, 0
    %s126 = sadd.s32 %s125, 1
    %s127 = scalar_select %p124, %s125, %s126
    %p130 = pneg %p124
    %p131 = scmp.eq.s32.totalorder %s10, 1
    %p132 = por %p130, %p131
    %p133 = scmp.ne.s32.totalorder %s125, %s128
    %p134 = scmp.eq.s32.totalorder %s10, 0
    %p135 = por %p133, %p134
    %p136 = scmp.ne.s32.totalorder %s125, %s128
    %p137 = scmp.eq.s32.totalorder %s15, 1
    %p138 = por %p136, %p137
    %p139 = scmp.ne.s32.totalorder %s128, %s129
    %p140 = scmp.eq.s32.totalorder %s15, 0
    %p141 = por %p139, %p140
    %p142 = scmp.ne.s32.totalorder %s128, %s129
    %p143 = scmp.eq.s32.totalorder %s16, 1
    %p144 = por %p142, %p143
    %p146 = scmp.ne.s32.totalorder %s129, %s145
    %p147 = scmp.eq.s32.totalorder %s16, 0
    %p148 = por %p146, %p147
    %p149 = scmp.le.s32.totalorder 1, %s10
    %p150 = scmp.lt.s32.totalorder %s10, 3
    %p151 = pnand %p149, %p150
    %p152 = pneg %p151
    // Predicated region
    $region9: #{tpu_custom_call.1} parent=5 // pred_check
      _
    $region10: #{tpu_custom_call.1} parent=5 // pred_check_branch
      %154 = sbr.rel (%p151) target = $region12
    $region11: #{tpu_custom_call.1} parent=5 // pred_region
      %s155 = ssub.s32 %s10, 1
    $region12: #{tpu_custom_call.1} parent=5 // pred_fallthru
      _
    %p156 = scmp.lt.s32.totalorder %s10, 2
    // Predicated region
    $region13: #{tpu_custom_call.1} parent=5 // pred_check
      %p157 = pneg %p156
    $region14: #{tpu_custom_call.1} parent=5 // pred_check_branch
      %159 = sbr.rel (%p157) target = $region16
    $region15: #{tpu_custom_call.1} parent=5 // pred_region
      // Predicated region
      $region17: #{tpu_custom_call.1} parent=15 // pred_check
        %p160 = pneg %p51
      $region18: #{tpu_custom_call.1} parent=15 // pred_check_branch
        %162 = sbr.rel (%p160) target = $region20
      $region19: #{tpu_custom_call.1} parent=15 // pred_region
        %s163 = smul.u32 4, %s18
        %p164 = scmp.lt.s32.totalorder %s17, 1
        %s165 = scalar_select %p164, %s17, 1
        %p166 = scmp.lt.s32.totalorder %s163, 3
        %s167 = scalar_select %p166, %s163, 3
        %s168 = smul.addr %s165, 4
        %s169 = sadd.s32 %s167, %s168
        %s170 = smul.addr %s169, 8
        %s171 = scalar_lea.vmem %s0, %s170
        %s172 = smul.u32 4, %s18
      $region20: #{tpu_custom_call.1} parent=15 // pred_fallthru
        _
      // Predicated region
      $region21: #{tpu_custom_call.1} parent=15 // pred_check
        %p173 = pneg %p79
      $region22: #{tpu_custom_call.1} parent=15 // pred_check_branch
        %175 = sbr.rel (%p173) target = $region24
      $region23: #{tpu_custom_call.1} parent=15 // pred_region
        %s176 = smul.u32 6, %s19
        %p177 = scmp.lt.s32.totalorder %s17, 1
        %s178 = scalar_select %p177, %s17, 1
        %p179 = scmp.lt.s32.totalorder %s176, 5
        %s180 = scalar_select %p179, %s176, 5
        %s181 = smul.addr %s178, 6
        %s182 = sadd.s32 %s180, %s181
        %s183 = smul.addr %s182, 4
        %s184 = scalar_lea.vmem %s1, %s183
        %s185 = smul.u32 6, %s19
      $region24: #{tpu_custom_call.1} parent=15 // pred_fallthru
        _
    $region16: #{tpu_custom_call.1} parent=5 // pred_fallthru
      _
    %p186 = scmp.le.s32.totalorder 1, %s10
    %p187 = scmp.lt.s32.totalorder %s10, 3
    %p188 = pnand %p186, %p187
    %p189 = pneg %p188
    // Predicated region
    $region25: #{tpu_custom_call.1} parent=5 // pred_check
      _
    $region26: #{tpu_custom_call.1} parent=5 // pred_check_branch
      %191 = sbr.rel (%p188) target = $region28
    $region27: #{tpu_custom_call.1} parent=5 // pred_region
      %s192 = ssub.s32 %s10, 1
      %s193 = smul.u32 4, %s21
      %p194 = scmp.lt.s32.totalorder %s20, 1
      %s195 = scalar_select %p194, %s20, 1
      %p196 = scmp.lt.s32.totalorder %s193, 3
      %s197 = scalar_select %p196, %s193, 3
      %s198 = smul.addr %s195, 4
      %s199 = sadd.s32 %s197, %s198
      %s200 = smul.addr %s199, 8
      %s201 = scalar_lea.vmem %s0, %s200
      %p202 = pneg %p57
      %p203 = pneg %p54
      %s204 = smul.u32 6, %s22
      %p205 = scmp.lt.s32.totalorder %s20, 1
      %s206 = scalar_select %p205, %s20, 1
      %p207 = scmp.lt.s32.totalorder %s204, 5
      %s208 = scalar_select %p207, %s204, 5
      %s209 = smul.addr %s206, 6
      %s210 = sadd.s32 %s208, %s209
      %s211 = smul.addr %s210, 4
      %s212 = scalar_lea.vmem %s1, %s211
      %p213 = pneg %p85
      %p214 = pneg %p82
      %p215 = pneg %p113
      %p216 = pneg %p110
      %s217 = smul.u32 4, %s21
      %p218 = scmp.lt.s32.totalorder %s20, 1
      %s219 = scalar_select %p218, %s20, 1
      %p220 = scmp.lt.s32.totalorder %s217, 3
      %s221 = scalar_select %p220, %s217, 3
      %s222 = smul.addr %s219, 4
      %s223 = sadd.s32 %s221, %s222
      %s224 = smul.addr %s223, 8
      %s225 = scalar_lea.vmem %s2, %s224
      %p226 = pneg %p141
      %p227 = pneg %p138
      %s228 = smul.u32 4, %s21
      %p229 = scmp.lt.s32.totalorder %s20, 1
      %s230 = scalar_select %p229, %s20, 1
      %p231 = scmp.lt.s32.totalorder %s228, 3
      %s232 = scalar_select %p231, %s228, 3
      %s233 = smul.addr %s230, 4
      %s234 = sadd.s32 %s232, %s233
      %s235 = smul.addr %s234, 8
      %s236 = scalar_lea.vmem %s3, %s235
      %s237 = smul.u32 4, %s21
      %p238 = scmp.lt.s32.totalorder %s20, 1
      %s239 = scalar_select %p238, %s20, 1
      %p240 = scmp.lt.s32.totalorder %s237, 3
      %s241 = scalar_select %p240, %s237, 3
      %s242 = smul.addr %s239, 4
      %s243 = sadd.s32 %s241, %s242
      %s244 = smul.addr %s243, 8
      %s245 = scalar_lea.vmem %s0, %s244
      %s246 = smul.u32 4, %s21
      %s247 = smul.u32 6, %s22
      %p248 = scmp.lt.s32.totalorder %s20, 1
      %s249 = scalar_select %p248, %s20, 1
      %p250 = scmp.lt.s32.totalorder %s247, 5
      %s251 = scalar_select %p250, %s247, 5
      %s252 = smul.addr %s249, 6
      %s253 = sadd.s32 %s251, %s252
      %s254 = smul.addr %s253, 4
      %s255 = scalar_lea.vmem %s1, %s254
      %s256 = smul.u32 6, %s22
      %s257 = smul.u32 4, %s21
      %p258 = scmp.lt.s32.totalorder %s20, 1
      %s259 = scalar_select %p258, %s20, 1
      %p260 = scmp.lt.s32.totalorder %s257, 3
      %s261 = scalar_select %p260, %s257, 3
      %s262 = smul.addr %s259, 4
      %s263 = sadd.s32 %s261, %s262
      %s264 = smul.addr %s263, 8
      %s265 = scalar_lea.vmem %s2, %s264
      %s266 = smul.u32 4, %s21
      %s267 = smul.u32 4, %s21
      %p268 = scmp.lt.s32.totalorder %s20, 1
      %s269 = scalar_select %p268, %s20, 1
      %p270 = scmp.lt.s32.totalorder %s267, 3
      %s271 = scalar_select %p270, %s267, 3
      %s272 = smul.addr %s269, 4
      %s273 = sadd.s32 %s271, %s272
      %s274 = smul.addr %s273, 8
      %s275 = scalar_lea.vmem %s3, %s274
      %s276 = smul.u32 4, %s21
      %p278 = scmp.eq.s32.totalorder %s22, 0
      // Predicated region
      $region29: #{tpu_custom_call.1} parent=27 // pred_check
        %p279 = pneg %p278
      $region30: #{tpu_custom_call.1} parent=27 // pred_check_branch
        %281 = sbr.rel (%p279) target = $region32
      $region31: #{tpu_custom_call.1} parent=27 // pred_region
        %v282 = vld [vmem:[%s245] sm:$0xff]
        %v283 = vld [vmem:[%s245 + $0x8] sm:$0xff]
        %v284 = vld [vmem:[%s245 + $0x10] sm:$0xff]
        %v285 = vld [vmem:[%s245 + $0x18] sm:$0xff]
        %v286 = vmul.f32 %v282, %v282
        %v287 = vmul.f32 %v283, %v283
        %v288 = vmul.f32 %v284, %v284
        %v289 = vmul.f32 %v285, %v285
        %vm290 = vcmask 261120
        %v291 = vsel %vm290, %v286, 0.0
        %292 = vadd.xlane.f32.xlu0 %v291
        %v293 = vpop.xlane.xlu0 %292
        %v294 = vsel %vm290, %v287, 0.0
        %295 = vadd.xlane.f32.xlu0 %v294
        %v296 = vpop.xlane.xlu0 %295
        %v297 = vsel %vm290, %v288, 0.0
        %298 = vadd.xlane.f32.xlu0 %v297
        %v299 = vpop.xlane.xlu0 %298
        %v300 = vsel %vm290, %v289, 0.0
        %301 = vadd.xlane.f32.xlu0 %v300
        %v302 = vpop.xlane.xlu0 %301
        %v303 = vmax.f32 %v293, 1e-24
        %v304 = vmax.f32 %v296, 1e-24
        %v305 = vmax.f32 %v299, 1e-24
        %v306 = vmax.f32 %v302, 1e-24
        %v307 = vrsqrt.pop %v303
        %v308 = vmul.f32 %v307, %v303
        %v309 = vmul.f32 %v308, %v307
        %v310 = vmul.f32 0.5, %v309
        %v311 = vsub.f32 1.5, %v310
        %v312 = vmul.f32 %v307, %v311
        %vm313 = vweird.f32 %v303
        %vm314 = vweird.f32 %v307
        %vm315 = vmor %vm313, %vm314
        %v316 = vsel %vm315, %v307, %v312
        %v317 = vrsqrt.pop %v304
        %v318 = vmul.f32 %v317, %v304
        %v319 = vmul.f32 %v318, %v317
        %v320 = vmul.f32 0.5, %v319
        %v321 = vsub.f32 1.5, %v320
        %v322 = vmul.f32 %v317, %v321
        %vm323 = vweird.f32 %v304
        %vm324 = vweird.f32 %v317
        %vm325 = vmor %vm323, %vm324
        %v326 = vsel %vm325, %v317, %v322
        %v327 = vrsqrt.pop %v305
        %v328 = vmul.f32 %v327, %v305
        %v329 = vmul.f32 %v328, %v327
        %v330 = vmul.f32 0.5, %v329
        %v331 = vsub.f32 1.5, %v330
        %v332 = vmul.f32 %v327, %v331
        %vm333 = vweird.f32 %v305
        %vm334 = vweird.f32 %v327
        %vm335 = vmor %vm333, %vm334
        %v336 = vsel %vm335, %v327, %v332
        %v337 = vrsqrt.pop %v306
        %v338 = vmul.f32 %v337, %v306
        %v339 = vmul.f32 %v338, %v337
        %v340 = vmul.f32 0.5, %v339
        %v341 = vsub.f32 1.5, %v340
        %v342 = vmul.f32 %v337, %v341
        %vm343 = vweird.f32 %v306
        %vm344 = vweird.f32 %v337
        %vm345 = vmor %vm343, %vm344
        %v346 = vsel %vm345, %v337, %v342
        %v347 = vmul.f32 %v316, 20.0
        %v348 = vmul.f32 %v326, 20.0
        %v349 = vmul.f32 %v336, 20.0
        %v350 = vmul.f32 %v346, 20.0
        %v351 = vmul.f32 %v282, %v347
        %v352 = vmul.f32 %v283, %v348
        %v353 = vmul.f32 %v284, %v349
        %v354 = vmul.f32 %v285, %v350
        %v355 = vpack.c.bf16 %v351, %v351
        %v356 = vpack.c.bf16 %v352, %v352
        %v357 = vpack.c.bf16 %v353, %v353
        %v358 = vpack.c.bf16 %v354, %v354
        %vm359 = vcmask 257024
        %360 = vst.msk [vmem:[#allocation2] sm:$0xf] %vm359, %v355
        %361 = vst.msk [vmem:[#allocation2 + $0x4] sm:$0xf] %vm359, %v356
        %362 = vst.msk [vmem:[#allocation2 + $0x8] sm:$0xf] %vm359, %v357
        %363 = vst.msk [vmem:[#allocation2 + $0xc] sm:$0xf] %vm359, %v358
        %vm364 = vcmask 31744
        %365 = vst.msk [vmem:[#allocation3] sm:$0xff] %vm364, -inf
        %366 = vst.msk [vmem:[#allocation3 + $0x8] sm:$0xff] %vm364, -inf
        %367 = vst.msk [vmem:[#allocation3 + $0x10] sm:$0xff] %vm364, -inf
        %368 = vst.msk [vmem:[#allocation3 + $0x18] sm:$0xff] %vm364, -inf
        %369 = vst.msk [vmem:[#allocation4] sm:$0xff] %vm364, 0
        %370 = vst.msk [vmem:[#allocation4 + $0x8] sm:$0xff] %vm364, 0
        %371 = vst.msk [vmem:[#allocation4 + $0x10] sm:$0xff] %vm364, 0
        %372 = vst.msk [vmem:[#allocation4 + $0x18] sm:$0xff] %vm364, 0
      $region32: #{tpu_custom_call.1} parent=27 // pred_fallthru
        _
      %v373 = vld [vmem:[#allocation2] sm:$0xf]
      %v374 = vld [vmem:[#allocation2 + $0x4] sm:$0xf]
      %v375 = vld [vmem:[#allocation2 + $0x8] sm:$0xf]
      %v376 = vld [vmem:[#allocation2 + $0xc] sm:$0xf]
      %v377 = vld [vmem:[%s255] sm:$0xf]
      %v378 = vld [vmem:[%s255 + $0x4] sm:$0xf]
      %v379 = vld [vmem:[%s255 + $0x8] sm:$0xf]
      %v380 = vld [vmem:[%s255 + $0xc] sm:$0xf]
      %v381 = vld [vmem:[%s255 + $0x10] sm:$0xf]
      %v382 = vld [vmem:[%s255 + $0x14] sm:$0xf]
      %v387 = vunpack.c.l.b16 %v373
      %v388 = vunpack.c.l.b16 %v374
      %v389 = vunpack.c.l.b16 %v375
      %v390 = vunpack.c.l.b16 %v376
      %v391 = vpack.c.b16 %v388, %v387
      %v392 = vpack.c.b16 %v390, %v389
      %v399 = vunpack.c.l.b16 %v377
      %v400 = vunpack.c.l.b16 %v378
      %v401 = vunpack.c.l.b16 %v379
      %v402 = vunpack.c.l.b16 %v380
      %v403 = vunpack.c.l.b16 %v381
      %v404 = vunpack.c.l.b16 %v382
      %v405 = vpack.c.b16 %v400, %v399
      %v406 = vpack.c.b16 %v402, %v401
      %v407 = vpack.c.b16 %v404, %v403
      %vm408 = vcmask 261120
      %v410 = vsel %vm408, %v391, 0
      %v413 = vsel %vm408, %v392, 0
      %v416 = vsel %vm408, %v405, 0
      %v419 = vsel %vm408, %v406, 0
      %v422 = vsel %vm408, %v407, 0
      %424 = vmatpush.bf16.xpose.msra.mxu0 0
      %425 = vmatpush.bf16.xpose.msra.mxu0 0
      %426 = vmatpush.bf16.xpose.msra.mxu0 0
      %427 = vmatpush.bf16.xpose.msra.mxu0 0
      %428 = vmatpush.bf16.xpose.msra.mxu0 0
      %429 = vmatpush.bf16.xpose.msra.mxu0 %v422
      %430 = vmatpush.bf16.xpose.msra.mxu0 %v419
      %431 = vmatpush.bf16.xpose.msra.mxu0 %v416
      %432 = vmatmul.bf16.gmra.mxu0 %v410
      %v433 = vpop.f32.mrf.mxu0
      %v434 = vadd.f32 0.0, %v433
      %v435 = vpop.f32.mrf.mxu0
      %v436 = vadd.f32 0.0, %v435
      %437 = vmatmul.bf16.gmra.mxu0 %v413
      %v438 = vpop.f32.mrf.mxu0
      %v439 = vadd.f32 0.0, %v438
      %v440 = vpop.f32.mrf.mxu0
      %v441 = vadd.f32 0.0, %v440
      %442 = vdwg.mxu0
      %v443 = vlaneseq
      %v444 = vand.u32 %v443, 127
      %s445 = smul.u32 %s22, 48
      %vm446 = vcmask 392192
      %v447 = vsel %vm446, %v434, -inf
      %448 = vmax.xlane.f32.xlu0 %v447
      %v449 = vpop.xlane.xlu0 %448
      %v450 = vsel %vm446, %v436, -inf
      %451 = vmax.xlane.f32.xlu0 %v450
      %v452 = vpop.xlane.xlu0 %451
      %v453 = vsel %vm446, %v439, -inf
      %454 = vmax.xlane.f32.xlu0 %v453
      %v455 = vpop.xlane.xlu0 %454
      %v456 = vsel %vm446, %v441, -inf
      %457 = vmax.xlane.f32.xlu0 %v456
      %v458 = vpop.xlane.xlu0 %457
      %vm459 = vcmp.eq.f32.partialorder %v434, %v449
      %vm460 = vcmp.eq.f32.partialorder %v436, %v452
      %vm461 = vcmp.eq.f32.partialorder %v439, %v455
      %vm462 = vcmp.eq.f32.partialorder %v441, %v458
      %v463 = vsel %vm459, %v444, 48
      %v464 = vsel %vm460, %v444, 48
      %v465 = vsel %vm461, %v444, 48
      %v466 = vsel %vm462, %v444, 48
      %v467 = vsel %vm446, %v463, 2147483647
      %v468 = vand.u32 %v467, 65535
      %v469 = vshra.s32 %v467, 16
      %v470 = vcvt.s32.f32 %v468
      %v471 = vcvt.s32.f32 %v469
      %472 = vmin.xlane.f32.xlu0 %v471
      %v473 = vpop.xlane.xlu0 %472
      %vm474 = vcmp.eq.f32.partialorder %v471, %v473
      %v475 = vsel %vm474, %v470, inf
      %476 = vmin.xlane.f32.xlu0 %v475
      %v477 = vpop.xlane.xlu0 %476
      %v478 = vcvt.f32.s32 %v477
      %v479 = vcvt.f32.s32 %v473
      %v480 = vshll.u32 %v479, 16
      %v481 = vadd.s32 %v480, %v478
      %v482 = vsel %vm446, %v464, 2147483647
      %v483 = vand.u32 %v482, 65535
      %v484 = vshra.s32 %v482, 16
      %v485 = vcvt.s32.f32 %v483
      %v486 = vcvt.s32.f32 %v484
      %487 = vmin.xlane.f32.xlu0 %v486
      %v488 = vpop.xlane.xlu0 %487
      %vm489 = vcmp.eq.f32.partialorder %v486, %v488
      %v490 = vsel %vm489, %v485, inf
      %491 = vmin.xlane.f32.xlu0 %v490
      %v492 = vpop.xlane.xlu0 %491
      %v493 = vcvt.f32.s32 %v492
      %v494 = vcvt.f32.s32 %v488
      %v495 = vshll.u32 %v494, 16
      %v496 = vadd.s32 %v495, %v493
      %v497 = vsel %vm446, %v465, 2147483647
      %v498 = vand.u32 %v497, 65535
      %v499 = vshra.s32 %v497, 16
      %v500 = vcvt.s32.f32 %v498
      %v501 = vcvt.s32.f32 %v499
      %502 = vmin.xlane.f32.xlu0 %v501
      %v503 = vpop.xlane.xlu0 %502
      %vm504 = vcmp.eq.f32.partialorder %v501, %v503
      %v505 = vsel %vm504, %v500, inf
      %506 = vmin.xlane.f32.xlu0 %v505
      %v507 = vpop.xlane.xlu0 %506
      %v508 = vcvt.f32.s32 %v507
      %v509 = vcvt.f32.s32 %v503
      %v510 = vshll.u32 %v509, 16
      %v511 = vadd.s32 %v510, %v508
      %v512 = vsel %vm446, %v466, 2147483647
      %v513 = vand.u32 %v512, 65535
      %v514 = vshra.s32 %v512, 16
      %v515 = vcvt.s32.f32 %v513
      %v516 = vcvt.s32.f32 %v514
      %517 = vmin.xlane.f32.xlu0 %v516
      %v518 = vpop.xlane.xlu0 %517
      %vm519 = vcmp.eq.f32.partialorder %v516, %v518
      %v520 = vsel %vm519, %v515, inf
      %521 = vmin.xlane.f32.xlu0 %v520
      %v522 = vpop.xlane.xlu0 %521
      %v523 = vcvt.f32.s32 %v522
      %v524 = vcvt.f32.s32 %v518
      %v525 = vshll.u32 %v524, 16
      %v526 = vadd.s32 %v525, %v523
      %v527 = vstv %s445
      %v528 = vadd.s32 %v481, %v527
      %v529 = vadd.s32 %v496, %v527
      %v530 = vadd.s32 %v511, %v527
      %v531 = vadd.s32 %v526, %v527
      %vm532 = vcmp.eq.s32.totalorder %v444, %v481
      %vm533 = vcmp.eq.s32.totalorder %v444, %v496
      %vm534 = vcmp.eq.s32.totalorder %v444, %v511
      %vm535 = vcmp.eq.s32.totalorder %v444, %v526
      %v536 = vsel %vm532, -inf, %v434
      %v537 = vsel %vm533, -inf, %v436
      %v538 = vsel %vm534, -inf, %v439
      %v539 = vsel %vm535, -inf, %v441
      %v540 = vsel %vm446, %v536, -inf
      %541 = vmax.xlane.f32.xlu0 %v540
      %v542 = vpop.xlane.xlu0 %541
      %v543 = vsel %vm446, %v537, -inf
      %544 = vmax.xlane.f32.xlu0 %v543
      %v545 = vpop.xlane.xlu0 %544
      %v546 = vsel %vm446, %v538, -inf
      %547 = vmax.xlane.f32.xlu0 %v546
      %v548 = vpop.xlane.xlu0 %547
      %v549 = vsel %vm446, %v539, -inf
      %550 = vmax.xlane.f32.xlu0 %v549
      %v551 = vpop.xlane.xlu0 %550
      %vm552 = vcmp.eq.f32.partialorder %v536, %v542
      %vm553 = vcmp.eq.f32.partialorder %v537, %v545
      %vm554 = vcmp.eq.f32.partialorder %v538, %v548
      %vm555 = vcmp.eq.f32.partialorder %v539, %v551
      %v556 = vsel %vm552, %v444, 48
      %v557 = vsel %vm553, %v444, 48
      %v558 = vsel %vm554, %v444, 48
      %v559 = vsel %vm555, %v444, 48
      %v560 = vsel %vm446, %v556, 2147483647
      %v561 = vand.u32 %v560, 65535
      %v562 = vshra.s32 %v560, 16
      %v563 = vcvt.s32.f32 %v561
      %v564 = vcvt.s32.f32 %v562
      %565 = vmin.xlane.f32.xlu0 %v564
      %v566 = vpop.xlane.xlu0 %565
      %vm567 = vcmp.eq.f32.partialorder %v564, %v566
      %v568 = vsel %vm567, %v563, inf
      %569 = vmin.xlane.f32.xlu0 %v568
      %v570 = vpop.xlane.xlu0 %569
      %v571 = vcvt.f32.s32 %v570
      %v572 = vcvt.f32.s32 %v566
      %v573 = vshll.u32 %v572, 16
      %v574 = vadd.s32 %v573, %v571
      %v575 = vsel %vm446, %v557, 2147483647
      %v576 = vand.u32 %v575, 65535
      %v577 = vshra.s32 %v575, 16
      %v578 = vcvt.s32.f32 %v576
      %v579 = vcvt.s32.f32 %v577
      %580 = vmin.xlane.f32.xlu0 %v579
      %v581 = vpop.xlane.xlu0 %580
      %vm582 = vcmp.eq.f32.partialorder %v579, %v581
      %v583 = vsel %vm582, %v578, inf
      %584 = vmin.xlane.f32.xlu0 %v583
      %v585 = vpop.xlane.xlu0 %584
      %v586 = vcvt.f32.s32 %v585
      %v587 = vcvt.f32.s32 %v581
      %v588 = vshll.u32 %v587, 16
      %v589 = vadd.s32 %v588, %v586
      %v590 = vsel %vm446, %v558, 2147483647
      %v591 = vand.u32 %v590, 65535
      %v592 = vshra.s32 %v590, 16
      %v593 = vcvt.s32.f32 %v591
      %v594 = vcvt.s32.f32 %v592
      %595 = vmin.xlane.f32.xlu0 %v594
      %v596 = vpop.xlane.xlu0 %595
      %vm597 = vcmp.eq.f32.partialorder %v594, %v596
      %v598 = vsel %vm597, %v593, inf
      %599 = vmin.xlane.f32.xlu0 %v598
      %v600 = vpop.xlane.xlu0 %599
      %v601 = vcvt.f32.s32 %v600
      %v602 = vcvt.f32.s32 %v596
      %v603 = vshll.u32 %v602, 16
      %v604 = vadd.s32 %v603, %v601
      %v605 = vsel %vm446, %v559, 2147483647
      %v606 = vand.u32 %v605, 65535
      %v607 = vshra.s32 %v605, 16
      %v608 = vcvt.s32.f32 %v606
      %v609 = vcvt.s32.f32 %v607
      %610 = vmin.xlane.f32.xlu0 %v609
      %v611 = vpop.xlane.xlu0 %610
      %vm612 = vcmp.eq.f32.partialorder %v609, %v611
      %v613 = vsel %vm612, %v608, inf
      %614 = vmin.xlane.f32.xlu0 %v613
      %v615 = vpop.xlane.xlu0 %614
      %v616 = vcvt.f32.s32 %v615
      %v617 = vcvt.f32.s32 %v611
      %v618 = vshll.u32 %v617, 16
      %v619 = vadd.s32 %v618, %v616
      %v620 = vadd.s32 %v574, %v527
      %v621 = vadd.s32 %v589, %v527
      %v622 = vadd.s32 %v604, %v527
      %v623 = vadd.s32 %v619, %v527
      %vm624 = vcmp.eq.s32.totalorder %v444, %v574
      %vm625 = vcmp.eq.s32.totalorder %v444, %v589
      %vm626 = vcmp.eq.s32.totalorder %v444, %v604
      %vm627 = vcmp.eq.s32.totalorder %v444, %v619
      %v628 = vsel %vm624, -inf, %v536
      %v629 = vsel %vm625, -inf, %v537
      %v630 = vsel %vm626, -inf, %v538
      %v631 = vsel %vm627, -inf, %v539
      %v632 = vsel %vm446, %v628, -inf
      %633 = vmax.xlane.f32.xlu0 %v632
      %v634 = vpop.xlane.xlu0 %633
      %v635 = vsel %vm446, %v629, -inf
      %636 = vmax.xlane.f32.xlu0 %v635
      %v637 = vpop.xlane.xlu0 %636
      %v638 = vsel %vm446, %v630, -inf
      %639 = vmax.xlane.f32.xlu0 %v638
      %v640 = vpop.xlane.xlu0 %639
      %v641 = vsel %vm446, %v631, -inf
      %642 = vmax.xlane.f32.xlu0 %v641
      %v643 = vpop.xlane.xlu0 %642
      %vm644 = vcmp.eq.f32.partialorder %v628, %v634
      %vm645 = vcmp.eq.f32.partialorder %v629, %v637
      %vm646 = vcmp.eq.f32.partialorder %v630, %v640
      %vm647 = vcmp.eq.f32.partialorder %v631, %v643
      %v648 = vsel %vm644, %v444, 48
      %v649 = vsel %vm645, %v444, 48
      %v650 = vsel %vm646, %v444, 48
      %v651 = vsel %vm647, %v444, 48
      %v652 = vsel %vm446, %v648, 2147483647
      %v653 = vand.u32 %v652, 65535
      %v654 = vshra.s32 %v652, 16
      %v655 = vcvt.s32.f32 %v653
      %v656 = vcvt.s32.f32 %v654
      %657 = vmin.xlane.f32.xlu0 %v656
      %v658 = vpop.xlane.xlu0 %657
      %vm659 = vcmp.eq.f32.partialorder %v656, %v658
      %v660 = vsel %vm659, %v655, inf
      %661 = vmin.xlane.f32.xlu0 %v660
      %v662 = vpop.xlane.xlu0 %661
      %v663 = vcvt.f32.s32 %v662
      %v664 = vcvt.f32.s32 %v658
      %v665 = vshll.u32 %v664, 16
      %v666 = vadd.s32 %v665, %v663
      %v667 = vsel %vm446, %v649, 2147483647
      %v668 = vand.u32 %v667, 65535
      %v669 = vshra.s32 %v667, 16
      %v670 = vcvt.s32.f32 %v668
      %v671 = vcvt.s32.f32 %v669
      %672 = vmin.xlane.f32.xlu0 %v671
      %v673 = vpop.xlane.xlu0 %672
      %vm674 = vcmp.eq.f32.partialorder %v671, %v673
      %v675 = vsel %vm674, %v670, inf
      %676 = vmin.xlane.f32.xlu0 %v675
      %v677 = vpop.xlane.xlu0 %676
      %v678 = vcvt.f32.s32 %v677
      %v679 = vcvt.f32.s32 %v673
      %v680 = vshll.u32 %v679, 16
      %v681 = vadd.s32 %v680, %v678
      %v682 = vsel %vm446, %v650, 2147483647
      %v683 = vand.u32 %v682, 65535
      %v684 = vshra.s32 %v682, 16
      %v685 = vcvt.s32.f32 %v683
      %v686 = vcvt.s32.f32 %v684
      %687 = vmin.xlane.f32.xlu0 %v686
      %v688 = vpop.xlane.xlu0 %687
      %vm689 = vcmp.eq.f32.partialorder %v686, %v688
      %v690 = vsel %vm689, %v685, inf
      %691 = vmin.xlane.f32.xlu0 %v690
      %v692 = vpop.xlane.xlu0 %691
      %v693 = vcvt.f32.s32 %v692
      %v694 = vcvt.f32.s32 %v688
      %v695 = vshll.u32 %v694, 16
      %v696 = vadd.s32 %v695, %v693
      %v697 = vsel %vm446, %v651, 2147483647
      %v698 = vand.u32 %v697, 65535
      %v699 = vshra.s32 %v697, 16
      %v700 = vcvt.s32.f32 %v698
      %v701 = vcvt.s32.f32 %v699
      %702 = vmin.xlane.f32.xlu0 %v701
      %v703 = vpop.xlane.xlu0 %702
      %vm704 = vcmp.eq.f32.partialorder %v701, %v703
      %v705 = vsel %vm704, %v700, inf
      %706 = vmin.xlane.f32.xlu0 %v705
      %v707 = vpop.xlane.xlu0 %706
      %v708 = vcvt.f32.s32 %v707
      %v709 = vcvt.f32.s32 %v703
      %v710 = vshll.u32 %v709, 16
      %v711 = vadd.s32 %v710, %v708
      %v712 = vadd.s32 %v666, %v527
      %v713 = vadd.s32 %v681, %v527
      %v714 = vadd.s32 %v696, %v527
      %v715 = vadd.s32 %v711, %v527
      %vm716 = vcmp.eq.s32.totalorder %v444, %v666
      %vm717 = vcmp.eq.s32.totalorder %v444, %v681
      %vm718 = vcmp.eq.s32.totalorder %v444, %v696
      %vm719 = vcmp.eq.s32.totalorder %v444, %v711
      %v720 = vsel %vm716, -inf, %v628
      %v721 = vsel %vm717, -inf, %v629
      %v722 = vsel %vm718, -inf, %v630
      %v723 = vsel %vm719, -inf, %v631
      %v724 = vsel %vm446, %v720, -inf
      %725 = vmax.xlane.f32.xlu0 %v724
      %v726 = vpop.xlane.xlu0 %725
      %v727 = vsel %vm446, %v721, -inf
      %728 = vmax.xlane.f32.xlu0 %v727
      %v729 = vpop.xlane.xlu0 %728
      %v730 = vsel %vm446, %v722, -inf
      %731 = vmax.xlane.f32.xlu0 %v730
      %v732 = vpop.xlane.xlu0 %731
      %v733 = vsel %vm446, %v723, -inf
      %734 = vmax.xlane.f32.xlu0 %v733
      %v735 = vpop.xlane.xlu0 %734
      %vm736 = vcmp.eq.f32.partialorder %v720, %v726
      %vm737 = vcmp.eq.f32.partialorder %v721, %v729
      %vm738 = vcmp.eq.f32.partialorder %v722, %v732
      %vm739 = vcmp.eq.f32.partialorder %v723, %v735
      %v740 = vsel %vm736, %v444, 48
      %v741 = vsel %vm737, %v444, 48
      %v742 = vsel %vm738, %v444, 48
      %v743 = vsel %vm739, %v444, 48
      %v744 = vsel %vm446, %v740, 2147483647
      %v745 = vand.u32 %v744, 65535
      %v746 = vshra.s32 %v744, 16
      %v747 = vcvt.s32.f32 %v745
      %v748 = vcvt.s32.f32 %v746
      %749 = vmin.xlane.f32.xlu0 %v748
      %v750 = vpop.xlane.xlu0 %749
      %vm751 = vcmp.eq.f32.partialorder %v748, %v750
      %v752 = vsel %vm751, %v747, inf
      %753 = vmin.xlane.f32.xlu0 %v752
      %v754 = vpop.xlane.xlu0 %753
      %v755 = vcvt.f32.s32 %v754
      %v756 = vcvt.f32.s32 %v750
      %v757 = vshll.u32 %v756, 16
      %v758 = vadd.s32 %v757, %v755
      %v759 = vsel %vm446, %v741, 2147483647
      %v760 = vand.u32 %v759, 65535
      %v761 = vshra.s32 %v759, 16
      %v762 = vcvt.s32.f32 %v760
      %v763 = vcvt.s32.f32 %v761
      %764 = vmin.xlane.f32.xlu0 %v763
      %v765 = vpop.xlane.xlu0 %764
      %vm766 = vcmp.eq.f32.partialorder %v763, %v765
      %v767 = vsel %vm766, %v762, inf
      %768 = vmin.xlane.f32.xlu0 %v767
      %v769 = vpop.xlane.xlu0 %768
      %v770 = vcvt.f32.s32 %v769
      %v771 = vcvt.f32.s32 %v765
      %v772 = vshll.u32 %v771, 16
      %v773 = vadd.s32 %v772, %v770
      %v774 = vsel %vm446, %v742, 2147483647
      %v775 = vand.u32 %v774, 65535
      %v776 = vshra.s32 %v774, 16
      %v777 = vcvt.s32.f32 %v775
      %v778 = vcvt.s32.f32 %v776
      %779 = vmin.xlane.f32.xlu0 %v778
      %v780 = vpop.xlane.xlu0 %779
      %vm781 = vcmp.eq.f32.partialorder %v778, %v780
      %v782 = vsel %vm781, %v777, inf
      %783 = vmin.xlane.f32.xlu0 %v782
      %v784 = vpop.xlane.xlu0 %783
      %v785 = vcvt.f32.s32 %v784
      %v786 = vcvt.f32.s32 %v780
      %v787 = vshll.u32 %v786, 16
      %v788 = vadd.s32 %v787, %v785
      %v789 = vsel %vm446, %v743, 2147483647
      %v790 = vand.u32 %v789, 65535
      %v791 = vshra.s32 %v789, 16
      %v792 = vcvt.s32.f32 %v790
      %v793 = vcvt.s32.f32 %v791
      %794 = vmin.xlane.f32.xlu0 %v793
      %v795 = vpop.xlane.xlu0 %794
      %vm796 = vcmp.eq.f32.partialorder %v793, %v795
      %v797 = vsel %vm796, %v792, inf
      %798 = vmin.xlane.f32.xlu0 %v797
      %v799 = vpop.xlane.xlu0 %798
      %v800 = vcvt.f32.s32 %v799
      %v801 = vcvt.f32.s32 %v795
      %v802 = vshll.u32 %v801, 16
      %v803 = vadd.s32 %v802, %v800
      %v804 = vadd.s32 %v758, %v527
      %v805 = vadd.s32 %v773, %v527
      %v806 = vadd.s32 %v788, %v527
      %v807 = vadd.s32 %v803, %v527
      %v808 = vld [vmem:[#allocation3] sm:$0xff]
      %v809 = vld [vmem:[#allocation3 + $0x8] sm:$0xff]
      %v810 = vld [vmem:[#allocation3 + $0x10] sm:$0xff]
      %v811 = vld [vmem:[#allocation3 + $0x18] sm:$0xff]
      %vm812 = vcmask 31744
      %v813 = vsel %vm812, %v808, %v449
      %v814 = vsel %vm812, %v809, %v452
      %v815 = vsel %vm812, %v810, %v455
      %v816 = vsel %vm812, %v811, %v458
      %vm817 = vcmask 39936
      %v818 = vsel %vm817, %v813, %v542
      %v819 = vsel %vm817, %v814, %v545
      %v820 = vsel %vm817, %v815, %v548
      %v821 = vsel %vm817, %v816, %v551
      %vm822 = vcmask 48128
      %v823 = vsel %vm822, %v818, %v634
      %v824 = vsel %vm822, %v819, %v637
      %v825 = vsel %vm822, %v820, %v640
      %v826 = vsel %vm822, %v821, %v643
      %vm827 = vcmask 56320
      %v828 = vsel %vm827, %v823, %v726
      %v829 = vsel %vm827, %v824, %v729
      %v830 = vsel %vm827, %v825, %v732
      %v831 = vsel %vm827, %v826, %v735
      %v832 = vld [vmem:[#allocation4] sm:$0xff]
      %v833 = vld [vmem:[#allocation4 + $0x8] sm:$0xff]
      %v834 = vld [vmem:[#allocation4 + $0x10] sm:$0xff]
      %v835 = vld [vmem:[#allocation4 + $0x18] sm:$0xff]
      %v836 = vsel %vm812, %v832, %v528
      %v837 = vsel %vm812, %v833, %v529
      %v838 = vsel %vm812, %v834, %v530
      %v839 = vsel %vm812, %v835, %v531
      %v840 = vsel %vm817, %v836, %v620
      %v841 = vsel %vm817, %v837, %v621
      %v842 = vsel %vm817, %v838, %v622
      %v843 = vsel %vm817, %v839, %v623
      %v844 = vsel %vm822, %v840, %v712
      %v845 = vsel %vm822, %v841, %v713
      %v846 = vsel %vm822, %v842, %v714
      %v847 = vsel %vm822, %v843, %v715
      %v848 = vsel %vm827, %v844, %v804
      %v849 = vsel %vm827, %v845, %v805
      %v850 = vsel %vm827, %v846, %v806
      %v851 = vsel %vm827, %v847, %v807
      %vm852 = vcmask 64512
      %v853 = vsel %vm852, %v828, -inf
      %854 = vmax.xlane.f32.xlu0 %v853
      %v855 = vpop.xlane.xlu0 %854
      %v856 = vsel %vm852, %v829, -inf
      %857 = vmax.xlane.f32.xlu0 %v856
      %v858 = vpop.xlane.xlu0 %857
      %v859 = vsel %vm852, %v830, -inf
      %860 = vmax.xlane.f32.xlu0 %v859
      %v861 = vpop.xlane.xlu0 %860
      %v862 = vsel %vm852, %v831, -inf
      %863 = vmax.xlane.f32.xlu0 %v862
      %v864 = vpop.xlane.xlu0 %863
      %vm865 = vcmp.eq.f32.partialorder %v828, %v855
      %vm866 = vcmp.eq.f32.partialorder %v829, %v858
      %vm867 = vcmp.eq.f32.partialorder %v830, %v861
      %vm868 = vcmp.eq.f32.partialorder %v831, %v864
      %v869 = vsel %vm865, %v848, 2147483647
      %v870 = vsel %vm866, %v849, 2147483647
      %v871 = vsel %vm867, %v850, 2147483647
      %v872 = vsel %vm868, %v851, 2147483647
      %v873 = vsel %vm852, %v869, 2147483647
      %v874 = vand.u32 %v873, 65535
      %v875 = vshra.s32 %v873, 16
      %v876 = vcvt.s32.f32 %v874
      %v877 = vcvt.s32.f32 %v875
      %878 = vmin.xlane.f32.xlu0 %v877
      %v879 = vpop.xlane.xlu0 %878
      %vm880 = vcmp.eq.f32.partialorder %v877, %v879
      %v881 = vsel %vm880, %v876, inf
      %882 = vmin.xlane.f32.xlu0 %v881
      %v883 = vpop.xlane.xlu0 %882
      %v884 = vcvt.f32.s32 %v883
      %v885 = vcvt.f32.s32 %v879
      %v886 = vshll.u32 %v885, 16
      %v887 = vadd.s32 %v886, %v884
      %v888 = vsel %vm852, %v870, 2147483647
      %v889 = vand.u32 %v888, 65535
      %v890 = vshra.s32 %v888, 16
      %v891 = vcvt.s32.f32 %v889
      %v892 = vcvt.s32.f32 %v890
      %893 = vmin.xlane.f32.xlu0 %v892
      %v894 = vpop.xlane.xlu0 %893
      %vm895 = vcmp.eq.f32.partialorder %v892, %v894
      %v896 = vsel %vm895, %v891, inf
      %897 = vmin.xlane.f32.xlu0 %v896
      %v898 = vpop.xlane.xlu0 %897
      %v899 = vcvt.f32.s32 %v898
      %v900 = vcvt.f32.s32 %v894
      %v901 = vshll.u32 %v900, 16
      %v902 = vadd.s32 %v901, %v899
      %v903 = vsel %vm852, %v871, 2147483647
      %v904 = vand.u32 %v903, 65535
      %v905 = vshra.s32 %v903, 16
      %v906 = vcvt.s32.f32 %v904
      %v907 = vcvt.s32.f32 %v905
      %908 = vmin.xlane.f32.xlu0 %v907
      %v909 = vpop.xlane.xlu0 %908
      %vm910 = vcmp.eq.f32.partialorder %v907, %v909
      %v911 = vsel %vm910, %v906, inf
      %912 = vmin.xlane.f32.xlu0 %v911
      %v913 = vpop.xlane.xlu0 %912
      %v914 = vcvt.f32.s32 %v913
      %v915 = vcvt.f32.s32 %v909
      %v916 = vshll.u32 %v915, 16
      %v917 = vadd.s32 %v916, %v914
      %v918 = vsel %vm852, %v872, 2147483647
      %v919 = vand.u32 %v918, 65535
      %v920 = vshra.s32 %v918, 16
      %v921 = vcvt.s32.f32 %v919
      %v922 = vcvt.s32.f32 %v920
      %923 = vmin.xlane.f32.xlu0 %v922
      %v924 = vpop.xlane.xlu0 %923
      %vm925 = vcmp.eq.f32.partialorder %v922, %v924
      %v926 = vsel %vm925, %v921, inf
      %927 = vmin.xlane.f32.xlu0 %v926
      %v928 = vpop.xlane.xlu0 %927
      %v929 = vcvt.f32.s32 %v928
      %v930 = vcvt.f32.s32 %v924
      %v931 = vshll.u32 %v930, 16
      %v932 = vadd.s32 %v931, %v929
      %vm933 = vcmp.eq.s32.totalorder %v848, %v887
      %vm934 = vcmp.eq.s32.totalorder %v849, %v902
      %vm935 = vcmp.eq.s32.totalorder %v850, %v917
      %vm936 = vcmp.eq.s32.totalorder %v851, %v932
      %v937 = vsel %vm933, -inf, %v828
      %v938 = vsel %vm934, -inf, %v829
      %v939 = vsel %vm935, -inf, %v830
      %v940 = vsel %vm936, -inf, %v831
      %v941 = vsel %vm852, %v937, -inf
      %942 = vmax.xlane.f32.xlu0 %v941
      %v943 = vpop.xlane.xlu0 %942
      %v944 = vsel %vm852, %v938, -inf
      %945 = vmax.xlane.f32.xlu0 %v944
      %v946 = vpop.xlane.xlu0 %945
      %v947 = vsel %vm852, %v939, -inf
      %948 = vmax.xlane.f32.xlu0 %v947
      %v949 = vpop.xlane.xlu0 %948
      %v950 = vsel %vm852, %v940, -inf
      %951 = vmax.xlane.f32.xlu0 %v950
      %v952 = vpop.xlane.xlu0 %951
      %vm953 = vcmp.eq.f32.partialorder %v937, %v943
      %vm954 = vcmp.eq.f32.partialorder %v938, %v946
      %vm955 = vcmp.eq.f32.partialorder %v939, %v949
      %vm956 = vcmp.eq.f32.partialorder %v940, %v952
      %v957 = vsel %vm953, %v848, 2147483647
      %v958 = vsel %vm954, %v849, 2147483647
      %v959 = vsel %vm955, %v850, 2147483647
      %v960 = vsel %vm956, %v851, 2147483647
      %v961 = vsel %vm852, %v957, 2147483647
      %v962 = vand.u32 %v961, 65535
      %v963 = vshra.s32 %v961, 16
      %v964 = vcvt.s32.f32 %v962
      %v965 = vcvt.s32.f32 %v963
      %966 = vmin.xlane.f32.xlu0 %v965
      %v967 = vpop.xlane.xlu0 %966
      %vm968 = vcmp.eq.f32.partialorder %v965, %v967
      %v969 = vsel %vm968, %v964, inf
      %970 = vmin.xlane.f32.xlu0 %v969
      %v971 = vpop.xlane.xlu0 %970
      %v972 = vcvt.f32.s32 %v971
      %v973 = vcvt.f32.s32 %v967
      %v974 = vshll.u32 %v973, 16
      %v975 = vadd.s32 %v974, %v972
      %v976 = vsel %vm852, %v958, 2147483647
      %v977 = vand.u32 %v976, 65535
      %v978 = vshra.s32 %v976, 16
      %v979 = vcvt.s32.f32 %v977
      %v980 = vcvt.s32.f32 %v978
      %981 = vmin.xlane.f32.xlu0 %v980
      %v982 = vpop.xlane.xlu0 %981
      %vm983 = vcmp.eq.f32.partialorder %v980, %v982
      %v984 = vsel %vm983, %v979, inf
      %985 = vmin.xlane.f32.xlu0 %v984
      %v986 = vpop.xlane.xlu0 %985
      %v987 = vcvt.f32.s32 %v986
      %v988 = vcvt.f32.s32 %v982
      %v989 = vshll.u32 %v988, 16
      %v990 = vadd.s32 %v989, %v987
      %v991 = vsel %vm852, %v959, 2147483647
      %v992 = vand.u32 %v991, 65535
      %v993 = vshra.s32 %v991, 16
      %v994 = vcvt.s32.f32 %v992
      %v995 = vcvt.s32.f32 %v993
      %996 = vmin.xlane.f32.xlu0 %v995
      %v997 = vpop.xlane.xlu0 %996
      %vm998 = vcmp.eq.f32.partialorder %v995, %v997
      %v999 = vsel %vm998, %v994, inf
      %1000 = vmin.xlane.f32.xlu0 %v999
      %v1001 = vpop.xlane.xlu0 %1000
      %v1002 = vcvt.f32.s32 %v1001
      %v1003 = vcvt.f32.s32 %v997
      %v1004 = vshll.u32 %v1003, 16
      %v1005 = vadd.s32 %v1004, %v1002
      %v1006 = vsel %vm852, %v960, 2147483647
      %v1007 = vand.u32 %v1006, 65535
      %v1008 = vshra.s32 %v1006, 16
      %v1009 = vcvt.s32.f32 %v1007
      %v1010 = vcvt.s32.f32 %v1008
      %1011 = vmin.xlane.f32.xlu0 %v1010
      %v1012 = vpop.xlane.xlu0 %1011
      %vm1013 = vcmp.eq.f32.partialorder %v1010, %v1012
      %v1014 = vsel %vm1013, %v1009, inf
      %1015 = vmin.xlane.f32.xlu0 %v1014
      %v1016 = vpop.xlane.xlu0 %1015
      %v1017 = vcvt.f32.s32 %v1016
      %v1018 = vcvt.f32.s32 %v1012
      %v1019 = vshll.u32 %v1018, 16
      %v1020 = vadd.s32 %v1019, %v1017
      %vm1021 = vcmp.eq.s32.totalorder %v848, %v975
      %vm1022 = vcmp.eq.s32.totalorder %v849, %v990
      %vm1023 = vcmp.eq.s32.totalorder %v850, %v1005
      %vm1024 = vcmp.eq.s32.totalorder %v851, %v1020
      %v1025 = vsel %vm1021, -inf, %v937
      %v1026 = vsel %vm1022, -inf, %v938
      %v1027 = vsel %vm1023, -inf, %v939
      %v1028 = vsel %vm1024, -inf, %v940
      %v1029 = vsel %vm852, %v1025, -inf
      %1030 = vmax.xlane.f32.xlu0 %v1029
      %v1031 = vpop.xlane.xlu0 %1030
      %v1032 = vsel %vm852, %v1026, -inf
      %1033 = vmax.xlane.f32.xlu0 %v1032
      %v1034 = vpop.xlane.xlu0 %1033
      %v1035 = vsel %vm852, %v1027, -inf
      %1036 = vmax.xlane.f32.xlu0 %v1035
      %v1037 = vpop.xlane.xlu0 %1036
      %v1038 = vsel %vm852, %v1028, -inf
      %1039 = vmax.xlane.f32.xlu0 %v1038
      %v1040 = vpop.xlane.xlu0 %1039
      %vm1041 = vcmp.eq.f32.partialorder %v1025, %v1031
      %vm1042 = vcmp.eq.f32.partialorder %v1026, %v1034
      %vm1043 = vcmp.eq.f32.partialorder %v1027, %v1037
      %vm1044 = vcmp.eq.f32.partialorder %v1028, %v1040
      %v1045 = vsel %vm1041, %v848, 2147483647
      %v1046 = vsel %vm1042, %v849, 2147483647
      %v1047 = vsel %vm1043, %v850, 2147483647
      %v1048 = vsel %vm1044, %v851, 2147483647
      %v1049 = vsel %vm852, %v1045, 2147483647
      %v1050 = vand.u32 %v1049, 65535
      %v1051 = vshra.s32 %v1049, 16
      %v1052 = vcvt.s32.f32 %v1050
      %v1053 = vcvt.s32.f32 %v1051
      %1054 = vmin.xlane.f32.xlu0 %v1053
      %v1055 = vpop.xlane.xlu0 %1054
      %vm1056 = vcmp.eq.f32.partialorder %v1053, %v1055
      %v1057 = vsel %vm1056, %v1052, inf
      %1058 = vmin.xlane.f32.xlu0 %v1057
      %v1059 = vpop.xlane.xlu0 %1058
      %v1060 = vcvt.f32.s32 %v1059
      %v1061 = vcvt.f32.s32 %v1055
      %v1062 = vshll.u32 %v1061, 16
      %v1063 = vadd.s32 %v1062, %v1060
      %v1064 = vsel %vm852, %v1046, 2147483647
      %v1065 = vand.u32 %v1064, 65535
      %v1066 = vshra.s32 %v1064, 16
      %v1067 = vcvt.s32.f32 %v1065
      %v1068 = vcvt.s32.f32 %v1066
      %1069 = vmin.xlane.f32.xlu0 %v1068
      %v1070 = vpop.xlane.xlu0 %1069
      %vm1071 = vcmp.eq.f32.partialorder %v1068, %v1070
      %v1072 = vsel %vm1071, %v1067, inf
      %1073 = vmin.xlane.f32.xlu0 %v1072
      %v1074 = vpop.xlane.xlu0 %1073
      %v1075 = vcvt.f32.s32 %v1074
      %v1076 = vcvt.f32.s32 %v1070
      %v1077 = vshll.u32 %v1076, 16
      %v1078 = vadd.s32 %v1077, %v1075
      %v1079 = vsel %vm852, %v1047, 2147483647
      %v1080 = vand.u32 %v1079, 65535
      %v1081 = vshra.s32 %v1079, 16
      %v1082 = vcvt.s32.f32 %v1080
      %v1083 = vcvt.s32.f32 %v1081
      %1084 = vmin.xlane.f32.xlu0 %v1083
      %v1085 = vpop.xlane.xlu0 %1084
      %vm1086 = vcmp.eq.f32.partialorder %v1083, %v1085
      %v1087 = vsel %vm1086, %v1082, inf
      %1088 = vmin.xlane.f32.xlu0 %v1087
      %v1089 = vpop.xlane.xlu0 %1088
      %v1090 = vcvt.f32.s32 %v1089
      %v1091 = vcvt.f32.s32 %v1085
      %v1092 = vshll.u32 %v1091, 16
      %v1093 = vadd.s32 %v1092, %v1090
      %v1094 = vsel %vm852, %v1048, 2147483647
      %v1095 = vand.u32 %v1094, 65535
      %v1096 = vshra.s32 %v1094, 16
      %v1097 = vcvt.s32.f32 %v1095
      %v1098 = vcvt.s32.f32 %v1096
      %1099 = vmin.xlane.f32.xlu0 %v1098
      %v1100 = vpop.xlane.xlu0 %1099
      %vm1101 = vcmp.eq.f32.partialorder %v1098, %v1100
      %v1102 = vsel %vm1101, %v1097, inf
      %1103 = vmin.xlane.f32.xlu0 %v1102
      %v1104 = vpop.xlane.xlu0 %1103
      %v1105 = vcvt.f32.s32 %v1104
      %v1106 = vcvt.f32.s32 %v1100
      %v1107 = vshll.u32 %v1106, 16
      %v1108 = vadd.s32 %v1107, %v1105
      %vm1109 = vcmp.eq.s32.totalorder %v848, %v1063
      %vm1110 = vcmp.eq.s32.totalorder %v849, %v1078
      %vm1111 = vcmp.eq.s32.totalorder %v850, %v1093
      %vm1112 = vcmp.eq.s32.totalorder %v851, %v1108
      %v1113 = vsel %vm1109, -inf, %v1025
      %v1114 = vsel %vm1110, -inf, %v1026
      %v1115 = vsel %vm1111, -inf, %v1027
      %v1116 = vsel %vm1112, -inf, %v1028
      %v1117 = vsel %vm852, %v1113, -inf
      %1118 = vmax.xlane.f32.xlu0 %v1117
      %v1119 = vpop.xlane.xlu0 %1118
      %v1120 = vsel %vm852, %v1114, -inf
      %1121 = vmax.xlane.f32.xlu0 %v1120
      %v1122 = vpop.xlane.xlu0 %1121
      %v1123 = vsel %vm852, %v1115, -inf
      %1124 = vmax.xlane.f32.xlu0 %v1123
      %v1125 = vpop.xlane.xlu0 %1124
      %v1126 = vsel %vm852, %v1116, -inf
      %1127 = vmax.xlane.f32.xlu0 %v1126
      %v1128 = vpop.xlane.xlu0 %1127
      %vm1129 = vcmp.eq.f32.partialorder %v1113, %v1119
      %vm1130 = vcmp.eq.f32.partialorder %v1114, %v1122
      %vm1131 = vcmp.eq.f32.partialorder %v1115, %v1125
      %vm1132 = vcmp.eq.f32.partialorder %v1116, %v1128
      %v1133 = vsel %vm1129, %v848, 2147483647
      %v1134 = vsel %vm1130, %v849, 2147483647
      %v1135 = vsel %vm1131, %v850, 2147483647
      %v1136 = vsel %vm1132, %v851, 2147483647
      %v1137 = vsel %vm852, %v1133, 2147483647
      %v1138 = vand.u32 %v1137, 65535
      %v1139 = vshra.s32 %v1137, 16
      %v1140 = vcvt.s32.f32 %v1138
      %v1141 = vcvt.s32.f32 %v1139
      %1142 = vmin.xlane.f32.xlu0 %v1141
      %v1143 = vpop.xlane.xlu0 %1142
      %vm1144 = vcmp.eq.f32.partialorder %v1141, %v1143
      %v1145 = vsel %vm1144, %v1140, inf
      %1146 = vmin.xlane.f32.xlu0 %v1145
      %v1147 = vpop.xlane.xlu0 %1146
      %v1148 = vcvt.f32.s32 %v1147
      %v1149 = vcvt.f32.s32 %v1143
      %v1150 = vshll.u32 %v1149, 16
      %v1151 = vadd.s32 %v1150, %v1148
      %v1152 = vsel %vm852, %v1134, 2147483647
      %v1153 = vand.u32 %v1152, 65535
      %v1154 = vshra.s32 %v1152, 16
      %v1155 = vcvt.s32.f32 %v1153
      %v1156 = vcvt.s32.f32 %v1154
      %1157 = vmin.xlane.f32.xlu0 %v1156
      %v1158 = vpop.xlane.xlu0 %1157
      %vm1159 = vcmp.eq.f32.partialorder %v1156, %v1158
      %v1160 = vsel %vm1159, %v1155, inf
      %1161 = vmin.xlane.f32.xlu0 %v1160
      %v1162 = vpop.xlane.xlu0 %1161
      %v1163 = vcvt.f32.s32 %v1162
      %v1164 = vcvt.f32.s32 %v1158
      %v1165 = vshll.u32 %v1164, 16
      %v1166 = vadd.s32 %v1165, %v1163
      %v1167 = vsel %vm852, %v1135, 2147483647
      %v1168 = vand.u32 %v1167, 65535
      %v1169 = vshra.s32 %v1167, 16
      %v1170 = vcvt.s32.f32 %v1168
      %v1171 = vcvt.s32.f32 %v1169
      %1172 = vmin.xlane.f32.xlu0 %v1171
      %v1173 = vpop.xlane.xlu0 %1172
      %vm1174 = vcmp.eq.f32.partialorder %v1171, %v1173
      %v1175 = vsel %vm1174, %v1170, inf
      %1176 = vmin.xlane.f32.xlu0 %v1175
      %v1177 = vpop.xlane.xlu0 %1176
      %v1178 = vcvt.f32.s32 %v1177
      %v1179 = vcvt.f32.s32 %v1173
      %v1180 = vshll.u32 %v1179, 16
      %v1181 = vadd.s32 %v1180, %v1178
      %v1182 = vsel %vm852, %v1136, 2147483647
      %v1183 = vand.u32 %v1182, 65535
      %v1184 = vshra.s32 %v1182, 16
      %v1185 = vcvt.s32.f32 %v1183
      %v1186 = vcvt.s32.f32 %v1184
      %1187 = vmin.xlane.f32.xlu0 %v1186
      %v1188 = vpop.xlane.xlu0 %1187
      %vm1189 = vcmp.eq.f32.partialorder %v1186, %v1188
      %v1190 = vsel %vm1189, %v1185, inf
      %1191 = vmin.xlane.f32.xlu0 %v1190
      %v1192 = vpop.xlane.xlu0 %1191
      %v1193 = vcvt.f32.s32 %v1192
      %v1194 = vcvt.f32.s32 %v1188
      %v1195 = vshll.u32 %v1194, 16
      %v1196 = vadd.s32 %v1195, %v1193
      %vm1197 = vcmask 7168
      %v1198 = vsel %vm1197, %v855, %v943
      %v1199 = vsel %vm1197, %v858, %v946
      %v1200 = vsel %vm1197, %v861, %v949
      %v1201 = vsel %vm1197, %v864, %v952
      %vm1202 = vcmask 15360
      %v1203 = vsel %vm1202, %v1198, %v1031
      %v1204 = vsel %vm1202, %v1199, %v1034
      %v1205 = vsel %vm1202, %v1200, %v1037
      %v1206 = vsel %vm1202, %v1201, %v1040
      %vm1207 = vcmask 23552
      %v1208 = vsel %vm1207, %v1203, %v1119
      %v1209 = vsel %vm1207, %v1204, %v1122
      %v1210 = vsel %vm1207, %v1205, %v1125
      %v1211 = vsel %vm1207, %v1206, %v1128
      %1212 = vst.msk [vmem:[#allocation3] sm:$0xff] %vm812, %v1208
      %1213 = vst.msk [vmem:[#allocation3 + $0x8] sm:$0xff] %vm812, %v1209
      %1214 = vst.msk [vmem:[#allocation3 + $0x10] sm:$0xff] %vm812, %v1210
      %1215 = vst.msk [vmem:[#allocation3 + $0x18] sm:$0xff] %vm812, %v1211
      %v1216 = vsel %vm1197, %v887, %v975
      %v1217 = vsel %vm1197, %v902, %v990
      %v1218 = vsel %vm1197, %v917, %v1005
      %v1219 = vsel %vm1197, %v932, %v1020
      %v1220 = vsel %vm1202, %v1216, %v1063
      %v1221 = vsel %vm1202, %v1217, %v1078
      %v1222 = vsel %vm1202, %v1218, %v1093
      %v1223 = vsel %vm1202, %v1219, %v1108
      %v1224 = vsel %vm1207, %v1220, %v1151
      %v1225 = vsel %vm1207, %v1221, %v1166
      %v1226 = vsel %vm1207, %v1222, %v1181
      %v1227 = vsel %vm1207, %v1223, %v1196
      %1228 = vst.msk [vmem:[#allocation4] sm:$0xff] %vm812, %v1224
      %1229 = vst.msk [vmem:[#allocation4 + $0x8] sm:$0xff] %vm812, %v1225
      %1230 = vst.msk [vmem:[#allocation4 + $0x10] sm:$0xff] %vm812, %v1226
      %1231 = vst.msk [vmem:[#allocation4 + $0x18] sm:$0xff] %vm812, %v1227
      // Predicated region
      $region33: #{tpu_custom_call.1} parent=27 // pred_check
        %p1232 = pneg %p278
      $region34: #{tpu_custom_call.1} parent=27 // pred_check_branch
        %1234 = sbr.rel (%p1232) target = $region36
      $region35: #{tpu_custom_call.1} parent=27 // pred_region
        %v1235 = vld [vmem:[#allocation3] sm:$0xff]
        %v1236 = vld [vmem:[#allocation3 + $0x8] sm:$0xff]
        %v1237 = vld [vmem:[#allocation3 + $0x10] sm:$0xff]
        %v1238 = vld [vmem:[#allocation3 + $0x18] sm:$0xff]
        %v1239 = vsel %vm812, %v1235, -inf
        %1240 = vmax.xlane.f32.xlu0 %v1239
        %v1241 = vpop.xlane.xlu0 %1240
        %v1242 = vsel %vm812, %v1236, -inf
        %1243 = vmax.xlane.f32.xlu0 %v1242
        %v1244 = vpop.xlane.xlu0 %1243
        %v1245 = vsel %vm812, %v1237, -inf
        %1246 = vmax.xlane.f32.xlu0 %v1245
        %v1247 = vpop.xlane.xlu0 %1246
        %v1248 = vsel %vm812, %v1238, -inf
        %1249 = vmax.xlane.f32.xlu0 %v1248
        %v1250 = vpop.xlane.xlu0 %1249
        %v1251 = vsub.f32 %v1235, %v1241
        %v1252 = vsub.f32 %v1236, %v1244
        %v1253 = vsub.f32 %v1237, %v1247
        %v1254 = vsub.f32 %v1238, %v1250
        %v1255 = vmul.f32 %v1251, 1.442695
        %v1256 = vpow.pop %v1255
        %v1257 = vmul.f32 %v1252, 1.442695
        %v1258 = vpow.pop %v1257
        %v1259 = vmul.f32 %v1253, 1.442695
        %v1260 = vpow.pop %v1259
        %v1261 = vmul.f32 %v1254, 1.442695
        %v1262 = vpow.pop %v1261
        %v1263 = vsel %vm812, %v1256, 0.0
        %1264 = vadd.xlane.f32.xlu0 %v1263
        %v1265 = vpop.xlane.xlu0 %1264
        %v1266 = vsel %vm812, %v1258, 0.0
        %1267 = vadd.xlane.f32.xlu0 %v1266
        %v1268 = vpop.xlane.xlu0 %1267
        %v1269 = vsel %vm812, %v1260, 0.0
        %1270 = vadd.xlane.f32.xlu0 %v1269
        %v1271 = vpop.xlane.xlu0 %1270
        %v1272 = vsel %vm812, %v1262, 0.0
        %1273 = vadd.xlane.f32.xlu0 %v1272
        %v1274 = vpop.xlane.xlu0 %1273
        %v1275 = vrcp.pop %v1265
        %v1276 = vmul.f32 %v1265, %v1275
        %v1277 = vsub.f32 1.0, %v1276
        %v1278 = vmul.f32 %v1275, %v1277
        %v1279 = vadd.f32 %v1275, %v1278
        %vm1280 = vweird.f32 %v1265
        %vm1281 = vweird.f32 %v1275
        %vm1282 = vmor %vm1280, %vm1281
        %v1283 = vsel %vm1282, %v1275, %v1279
        %v1284 = vand.u32 2147483647, %v1265
        %vm1285 = vcmp.eq.f32.partialorder %v1284, 8.507059e+37
        %v1286 = vand.u32 %v1265, 2147483648
        %v1287 = vor.u32 1.1754944e-38, %v1286
        %v1288 = vsel %vm1285, %v1287, %v1283
        %v1289 = vmul.f32 %v1256, %v1288
        %v1290 = vrcp.pop %v1268
        %v1291 = vmul.f32 %v1268, %v1290
        %v1292 = vsub.f32 1.0, %v1291
        %v1293 = vmul.f32 %v1290, %v1292
        %v1294 = vadd.f32 %v1290, %v1293
        %vm1295 = vweird.f32 %v1268
        %vm1296 = vweird.f32 %v1290
        %vm1297 = vmor %vm1295, %vm1296
        %v1298 = vsel %vm1297, %v1290, %v1294
        %v1299 = vand.u32 2147483647, %v1268
        %vm1300 = vcmp.eq.f32.partialorder %v1299, 8.507059e+37
        %v1301 = vand.u32 %v1268, 2147483648
        %v1302 = vor.u32 1.1754944e-38, %v1301
        %v1303 = vsel %vm1300, %v1302, %v1298
        %v1304 = vmul.f32 %v1258, %v1303
        %v1305 = vrcp.pop %v1271
        %v1306 = vmul.f32 %v1271, %v1305
        %v1307 = vsub.f32 1.0, %v1306
        %v1308 = vmul.f32 %v1305, %v1307
        %v1309 = vadd.f32 %v1305, %v1308
        %vm1310 = vweird.f32 %v1271
        %vm1311 = vweird.f32 %v1305
        %vm1312 = vmor %vm1310, %vm1311
        %v1313 = vsel %vm1312, %v1305, %v1309
        %v1314 = vand.u32 2147483647, %v1271
        %vm1315 = vcmp.eq.f32.partialorder %v1314, 8.507059e+37
        %v1316 = vand.u32 %v1271, 2147483648
        %v1317 = vor.u32 1.1754944e-38, %v1316
        %v1318 = vsel %vm1315, %v1317, %v1313
        %v1319 = vmul.f32 %v1260, %v1318
        %v1320 = vrcp.pop %v1274
        %v1321 = vmul.f32 %v1274, %v1320
        %v1322 = vsub.f32 1.0, %v1321
        %v1323 = vmul.f32 %v1320, %v1322
        %v1324 = vadd.f32 %v1320, %v1323
        %vm1325 = vweird.f32 %v1274
        %vm1326 = vweird.f32 %v1320
        %vm1327 = vmor %vm1325, %vm1326
        %v1328 = vsel %vm1327, %v1320, %v1324
        %v1329 = vand.u32 2147483647, %v1274
        %vm1330 = vcmp.eq.f32.partialorder %v1329, 8.507059e+37
        %v1331 = vand.u32 %v1274, 2147483648
        %v1332 = vor.u32 1.1754944e-38, %v1331
        %v1333 = vsel %vm1330, %v1332, %v1328
        %v1334 = vmul.f32 %v1262, %v1333
        %1335 = vst.msk [vmem:[%s265] sm:$0xff] %vm812, %v1289
        %1336 = vst.msk [vmem:[%s265 + $0x8] sm:$0xff] %vm812, %v1304
        %1337 = vst.msk [vmem:[%s265 + $0x10] sm:$0xff] %vm812, %v1319
        %1338 = vst.msk [vmem:[%s265 + $0x18] sm:$0xff] %vm812, %v1334
        %v1339 = vld [vmem:[#allocation4] sm:$0xff]
        %v1340 = vld [vmem:[#allocation4 + $0x8] sm:$0xff]
        %v1341 = vld [vmem:[#allocation4 + $0x10] sm:$0xff]
        %v1342 = vld [vmem:[#allocation4 + $0x18] sm:$0xff]
        %1343 = vst.msk [vmem:[%s275] sm:$0xff] %vm812, %v1339
        %1344 = vst.msk [vmem:[%s275 + $0x8] sm:$0xff] %vm812, %v1340
        %1345 = vst.msk [vmem:[%s275 + $0x10] sm:$0xff] %vm812, %v1341
        %1346 = vst.msk [vmem:[%s275 + $0x18] sm:$0xff] %vm812, %v1342
      $region36: #{tpu_custom_call.1} parent=27 // pred_fallthru
        _
      %s1347 = smul.u32 4, %s21
      %p1348 = scmp.lt.s32.totalorder %s20, 1
      %s1349 = scalar_select %p1348, %s20, 1
      %p1350 = scmp.lt.s32.totalorder %s1347, 3
      %s1351 = scalar_select %p1350, %s1347, 3
      %s1352 = smul.addr %s1349, 4
      %s1353 = sadd.s32 %s1351, %s1352
      %s1354 = smul.addr %s1353, 8
      %s1355 = scalar_lea.vmem %s2, %s1354
      %s1356 = smul.u32 4, %s21
      %p1357 = scmp.lt.s32.totalorder %s20, 1
      %s1358 = scalar_select %p1357, %s20, 1
      %p1359 = scmp.lt.s32.totalorder %s1356, 3
      %s1360 = scalar_select %p1359, %s1356, 3
      %s1361 = smul.addr %s1358, 4
      %s1362 = sadd.s32 %s1360, %s1361
      %s1363 = smul.addr %s1362, 8
      %s1364 = scalar_lea.vmem %s3, %s1363
      // Predicated region
      $region37: #{tpu_custom_call.1} parent=27 // pred_check
        %p1365 = pneg %p110
      $region38: #{tpu_custom_call.1} parent=27 // pred_check_branch
        %1367 = sbr.rel (%p1365) target = $region40
      $region39: #{tpu_custom_call.1} parent=27 // pred_region
        %s1368 = smul.u32 4, %s21
      $region40: #{tpu_custom_call.1} parent=27 // pred_fallthru
        _
      // Predicated region
      $region41: #{tpu_custom_call.1} parent=27 // pred_check
        %p1369 = pneg %p138
      $region42: #{tpu_custom_call.1} parent=27 // pred_check_branch
        %1371 = sbr.rel (%p1369) target = $region44
      $region43: #{tpu_custom_call.1} parent=27 // pred_region
        %s1372 = smul.u32 4, %s21
      $region44: #{tpu_custom_call.1} parent=27 // pred_fallthru
        _
    $region28: #{tpu_custom_call.1} parent=5 // pred_fallthru
      _
    %p1373 = scmp.le.s32.totalorder 2, %s10
    // Predicated region
    $region45: #{tpu_custom_call.1} parent=5 // pred_check
      %p1374 = pneg %p1373
    $region46: #{tpu_custom_call.1} parent=5 // pred_check_branch
      %1376 = sbr.rel (%p1374) target = $region48
    $region47: #{tpu_custom_call.1} parent=5 // pred_region
      %s1377 = ssub.s32 %s10, 2
      // Predicated region
      $region49: #{tpu_custom_call.1} parent=47 // pred_check
        %p1378 = pneg %p116
      $region50: #{tpu_custom_call.1} parent=47 // pred_check_branch
        %1380 = sbr.rel (%p1378) target = $region52
      $region51: #{tpu_custom_call.1} parent=47 // pred_region
        %s1381 = smul.u32 4, %s24
        %p1382 = scmp.lt.s32.totalorder %s23, 1
        %s1383 = scalar_select %p1382, %s23, 1
        %p1384 = scmp.lt.s32.totalorder %s1381, 3
        %s1385 = scalar_select %p1384, %s1381, 3
        %s1386 = smul.addr %s1383, 4
        %s1387 = sadd.s32 %s1385, %s1386
        %s1388 = smul.addr %s1387, 8
        %s1389 = scalar_lea.vmem %s2, %s1388
      $region52: #{tpu_custom_call.1} parent=47 // pred_fallthru
        _
      // Predicated region
      $region53: #{tpu_custom_call.1} parent=47 // pred_check
        %p1390 = pneg %p144
      $region54: #{tpu_custom_call.1} parent=47 // pred_check_branch
        %1392 = sbr.rel (%p1390) target = $region56
      $region55: #{tpu_custom_call.1} parent=47 // pred_region
        %s1393 = smul.u32 4, %s24
        %p1394 = scmp.lt.s32.totalorder %s23, 1
        %s1395 = scalar_select %p1394, %s23, 1
        %p1396 = scmp.lt.s32.totalorder %s1393, 3
        %s1397 = scalar_select %p1396, %s1393, 3
        %s1398 = smul.addr %s1395, 4
        %s1399 = sadd.s32 %s1397, %s1398
        %s1400 = smul.addr %s1399, 8
        %s1401 = scalar_lea.vmem %s3, %s1400
      $region56: #{tpu_custom_call.1} parent=47 // pred_fallthru
        _
    $region48: #{tpu_custom_call.1} parent=5 // pred_fallthru
      _
  $region6: #{tpu_custom_call.1} parent=0 // loop_footer
    %s14 = sadd.s32 1, %s10
  $region7: #{tpu_custom_call.1} parent=0 // loop_footer_branch
    %9 = sbr.rel target = $region3
  $region8: #{tpu_custom_call.1} parent=0 // loop_exit
    _

</llo_original>
